<compile_context>
chip_gen: v7x
topology: tpu7x:2x2x1
jax: 0.10.0
libtpu: 0.0.40
codegen_flags: <defaults>
</compile_context>

<pallas_src>
import functools
import math

import numpy as np
import jax
import jax.numpy as jnp
from jax.experimental import pallas as pl
from jax.experimental.pallas import tpu as pltpu


# ---------------------------------------------------------------------------
# D8 regular-representation basis (used by the pure-JAX reference; the kernel
# uses the structured/hand-factored equivalent of the same orthogonal matrix).
# Rows = group elements (r^0..r^3, m r^0..m r^3); columns = irrep coefficients
# [A1, A2, B1, B2, E1_x, E1_y, E2_x, E2_y].
# ---------------------------------------------------------------------------
_SQ8 = 1.0 / math.sqrt(8.0)
_COS = (1.0, 0.0, -1.0, 0.0)
_SIN = (0.0, 1.0, 0.0, -1.0)


def _d8_regular_basis():
    rows = []
    for j in range(4):                       # rotations r^j
        c, s = _COS[j], _SIN[j]
        rows.append([_SQ8, _SQ8, _SQ8 * (-1.0) ** j, _SQ8 * (-1.0) ** j,
                     0.5 * c, 0.5 * s, -0.5 * s, 0.5 * c])
    for j in range(4):                       # reflections m r^j
        c, s = _COS[j], _SIN[j]
        rows.append([_SQ8, -_SQ8, _SQ8 * (-1.0) ** j, -_SQ8 * (-1.0) ** j,
                     0.5 * c, 0.5 * s, 0.5 * s, -0.5 * c])
    return rows


_M = _d8_regular_basis()


def _gelu(x):
    # tanh-approximate GELU (what a Triton GELU kernel typically implements)
    return jax.nn.gelu(x, approximate=True)


def _round_up(x, m):
    return ((x + m - 1) // m) * m


def _default_vmem_limit():
    # ~75% of physical VMEM: ~96 MiB on v5e/v6e (128 MiB), ~48 MiB on v7x (64 MiB).
    fallback = 64 * 1024 * 1024
    try:
        info = pltpu.get_tpu_info()
        cap = int(getattr(info, "vmem_capacity_bytes", fallback))
    except Exception:
        cap = fallback
    return (cap * 3) // 4


# ---------------------------------------------------------------------------
# Pallas kernel: fused MlpD8 forward for one tile of tokens.
#   5 activation inputs (one per irrep component), 12 weight/bias inputs,
#   5 activation outputs.  All matmuls accumulate in f32 on the MXU; the
#   GeluD8 basis transform runs in `edt` (bf16 on v6e/v7x, f32 on v5e/verify).
# ---------------------------------------------------------------------------
def _mlp_d8_kernel(xa1_ref, xa2_ref, xb1_ref, xb2_ref, x2d_ref,
                   w1a1, w1a2, w1b1, w1b2, w1e, b1a1,
                   w2a1, w2a2, w2b1, w2b2, w2e, b2a1,
                   ya1_ref, ya2_ref, yb1_ref, yb2_ref, y2d_ref,
                   *, cdt, edt):
    f32 = jnp.float32
    dot = lambda a, b: jnp.dot(a, b, preferred_element_type=f32)

    tn = xa1_ref.shape[0]              # token tile (static)
    c4 = x2d_ref.shape[-1] // 2        # E-irrep width
    h8 = w1a1.shape[-1]                # hidden // 8

    # ---- inputs: cast once to the MXU compute dtype -------------------------
    xa1 = xa1_ref[...].astype(cdt)
    xa2 = xa2_ref[...].astype(cdt)
    xb1 = xb1_ref[...].astype(cdt)
    xb2 = xb2_ref[...].astype(cdt)
    x2d = x2d_ref[...].astype(cdt)                       # (TN, 2*C4) = [Ex | Ey]
    # Stack the two planar components along the token axis -> one E dot.
    xe = jnp.concatenate([x2d[:, :c4], x2d[:, c4:]], axis=0)   # (2*TN, C4)

    bias1 = b1a1[...]                                    # (1, H8) f32
    bias2 = b2a1[...]                                    # (1, O8) f32

    # ---- fc1 (LinearD8): 4 scalar-irrep dots + 1 M-stacked fused-E dot ------
    ha1 = dot(xa1, w1a1[...]) + bias1
    ha2 = dot(xa2, w1a2[...])
    hb1 = dot(xb1, w1b1[...])
    hb2 = dot(xb2, w1b2[...])
    he = dot(xe, w1e[...])                               # (2*TN, 2*H8)

    # cast to the elementwise dtype for the GeluD8 section
    ha1 = ha1.astype(edt); ha2 = ha2.astype(edt)
    hb1 = hb1.astype(edt); hb2 = hb2.astype(edt)
    he = he.astype(edt)
    he1x = he[:tn, :h8]; he2x = he[:tn, h8:]             # x-planar rows
    he1y = he[tn:, :h8]; he2y = he[tn:, h8:]             # y-planar rows

    # ---- GeluD8: structured lift -> GELU -> project --------------------------
    # Scalar-irrep part is a scaled 4-point Hadamard; E part uses only +/-1
    # cos/sin entries (copies / negations), no generic 8x8 multiply loop.
    s8 = _SQ8
    u_pp = (ha1 + ha2) * s8
    u_pm = (ha1 - ha2) * s8
    v_pp = (hb1 + hb2) * s8
    v_pm = (hb1 - hb2) * s8
    S0 = u_pp + v_pp
    S1 = u_pp - v_pp
    S2 = u_pm + v_pm
    S3 = u_pm - v_pm
    E0 = 0.5 * (he1x + he2y)
    E1 = 0.5 * (he1y - he2x)
    E2 = 0.5 * (he1x - he2y)
    E3 = 0.5 * (he1y + he2x)
    # regular-rep coefficients (rows r^0..r^3, m r^0..m r^3) -> pointwise GELU
    z0 = _gelu(S0 + E0); z1 = _gelu(S1 + E1)
    z2 = _gelu(S0 - E0); z3 = _gelu(S1 - E1)
    z4 = _gelu(S2 + E2); z5 = _gelu(S3 + E3)
    z6 = _gelu(S2 - E2); z7 = _gelu(S3 - E3)
    # project back to irrep coefficients
    P0 = z0 + z2; M0 = z0 - z2
    P1 = z1 + z3; M1 = z1 - z3
    P2 = z4 + z6; M2 = z4 - z6
    P3 = z5 + z7; M3 = z5 - z7
    PP = (P0 + P1) * s8
    PM = (P0 - P1) * s8
    QP = (P2 + P3) * s8
    QM = (P2 - P3) * s8
    ga1 = PP + QP
    ga2 = PP - QP
    gb1 = PM + QM
    gb2 = PM - QM
    ge1x = 0.5 * (M0 + M2)
    ge1y = 0.5 * (M1 + M3)
    ge2x = 0.5 * (M3 - M1)
    ge2y = 0.5 * (M0 - M2)

    # drop1 / norm (Identity) / drop2 are no-ops (p = 0.0, norm_layer = None)

    # ---- fc2 (LinearD8): 4 scalar-irrep dots + 1 M-stacked fused-E dot ------
    ya1 = dot(ga1.astype(cdt), w2a1[...]) + bias2
    ya2 = dot(ga2.astype(cdt), w2a2[...])
    yb1 = dot(gb1.astype(cdt), w2b1[...])
    yb2 = dot(gb2.astype(cdt), w2b2[...])
    gex = jnp.concatenate([ge1x, ge2x], axis=-1)         # (TN, 2*H8)
    gey = jnp.concatenate([ge1y, ge2y], axis=-1)
    ge = jnp.concatenate([gex, gey], axis=0).astype(cdt)  # (2*TN, 2*H8)
    ye = dot(ge, w2e[...])                               # (2*TN, O4)

    odt = ya1_ref.dtype
    ya1_ref[...] = ya1.astype(odt)
    ya2_ref[...] = ya2.astype(odt)
    yb1_ref[...] = yb1.astype(odt)
    yb2_ref[...] = yb2.astype(odt)
    y2d_ref[...] = jnp.concatenate([ye[:tn], ye[tn:]], axis=-1).astype(odt)


# ---------------------------------------------------------------------------
# Parameter construction (deterministic, nn.Linear-like uniform init).
# ---------------------------------------------------------------------------
def init_mlp_d8_params(key, in_features, hidden_features, out_features):
    C, H, O = in_features, hidden_features, out_features
    assert C % 8 == 0 and H % 8 == 0 and O % 8 == 0
    ks = jax.random.split(key, 12)

    def u(k, shape, fan_in):
        b = 1.0 / math.sqrt(fan_in)
        return jax.random.uniform(k, shape, jnp.float32, -b, b)

    return dict(
        # fc1 = LinearD8(C, H): only lin_A1 has a bias
        w1_a1=u(ks[0], (H // 8, C // 8), C // 8),
        b1_a1=u(ks[1], (H // 8,), C // 8),
        w1_a2=u(ks[2], (H // 8, C // 8), C // 8),
        w1_b1=u(ks[3], (H // 8, C // 8), C // 8),
        w1_b2=u(ks[4], (H // 8, C // 8), C // 8),
        w1_e=u(ks[5], (H // 4, C // 4), C // 4),
        # fc2 = LinearD8(H, O)
        w2_a1=u(ks[6], (O // 8, H // 8), H // 8),
        b2_a1=u(ks[7], (O // 8,), H // 8),
        w2_a2=u(ks[8], (O // 8, H // 8), H // 8),
        w2_b1=u(ks[9], (O // 8, H // 8), H // 8),
        w2_b2=u(ks[10], (O // 8, H // 8), H // 8),
        w2_e=u(ks[11], (O // 4, H // 4), H // 4),
    )


# ---------------------------------------------------------------------------
# Wrapper: free reshapes + weight transposes + pallas_call.  No HBM-level
# packing / padding / unpacking of the activations.
# ---------------------------------------------------------------------------
def mlp_d8_forward(xs, params, *, token_tile=512,
                   compute_dtype=jnp.bfloat16,
                   elementwise_dtype=None,       # None -> compute_dtype
                   out_dtype=None,               # None -> input dtype
                   vmem_limit_bytes=None):       # None -> ~75% of physical VMEM
    x_a1, x_a2, x_b1, x_b2, x_2d = xs
    B, T, C8 = x_a1.shape
    C4 = x_2d.shape[-1]
    H8 = params["w1_a1"].shape[0]
    O8 = params["w2_a1"].shape[0]
    O4 = params["w2_e"].shape[0]
    N = B * T

    cdt = jnp.dtype(compute_dtype)
    edt = jnp.dtype(elementwise_dtype) if elementwise_dtype is not None else cdt
    odt = jnp.dtype(out_dtype) if out_dtype is not None else x_a1.dtype
    f32 = jnp.float32

    # Free row-major reshapes only (no packing pass over HBM).
    xa1 = x_a1.reshape(N, C8)
    xa2 = x_a2.reshape(N, C8)
    xb1 = x_b1.reshape(N, C8)
    xb2 = x_b2.reshape(N, C8)
    x2d = x_2d.reshape(N, 2 * C4)          # per-token [Ex | Ey]

    # Token tile: multiple of 8, at most ceil(N/2) so the token grid has >= 2
    # steps (megacore sharding on v7x; DMA/compute overlap everywhere).
    # Ragged last block is handled by the grid (no pad / trim).
    half_tokens = _round_up(max(8, pl.cdiv(N, 2)), 8)
    TN = max(8, min(_round_up(token_tile, 8), half_tokens))
    grid = (pl.cdiv(N, TN),)

    if vmem_limit_bytes is None:
        vmem_limit_bytes = _default_vmem_limit()

    # Weights pre-transposed to (in, out), cast to the MXU compute dtype.
    # Biases kept in f32 (added to the f32 accumulators).
    w1a1 = params["w1_a1"].T.astype(cdt)
    w1a2 = params["w1_a2"].T.astype(cdt)
    w1b1 = params["w1_b1"].T.astype(cdt)
    w1b2 = params["w1_b2"].T.astype(cdt)
    w1e = params["w1_e"].T.astype(cdt)           # (C4, 2*H8): fused E copies
    b1a1 = params["b1_a1"].reshape(1, H8).astype(f32)
    w2a1 = params["w2_a1"].T.astype(cdt)
    w2a2 = params["w2_a2"].T.astype(cdt)
    w2b1 = params["w2_b1"].T.astype(cdt)
    w2b2 = params["w2_b2"].T.astype(cdt)
    w2e = params["w2_e"].T.astype(cdt)           # (2*H8, O4): fused E copies
    b2a1 = params["b2_a1"].reshape(1, O8).astype(f32)

    weights = [w1a1, w1a2, w1b1, w1b2, w1e, b1a1,
               w2a1, w2a2, w2b1, w2b2, w2e, b2a1]

    tok_spec = lambda w: pl.BlockSpec((TN, w), lambda i: (i, 0))
    full_spec = lambda a: pl.BlockSpec(a.shape, lambda i: (0, 0))

    kernel = functools.partial(_mlp_d8_kernel, cdt=cdt, edt=edt)

    ya1, ya2, yb1, yb2, y2d = pl.pallas_call(
        kernel,
        out_shape=(
            jax.ShapeDtypeStruct((N, O8), odt),
            jax.ShapeDtypeStruct((N, O8), odt),
            jax.ShapeDtypeStruct((N, O8), odt),
            jax.ShapeDtypeStruct((N, O8), odt),
            jax.ShapeDtypeStruct((N, 2 * O4), odt),
        ),
        grid=grid,
        in_specs=[tok_spec(C8), tok_spec(C8), tok_spec(C8), tok_spec(C8),
                  tok_spec(2 * C4)] + [full_spec(w) for w in weights],
        out_specs=(tok_spec(O8), tok_spec(O8), tok_spec(O8), tok_spec(O8),
                   tok_spec(2 * O4)),
        compiler_params=pltpu.CompilerParams(
            dimension_semantics=("parallel",),
            vmem_limit_bytes=int(vmem_limit_bytes)),
    )(xa1, xa2, xb1, xb2, x2d, *weights)

    # Free reshapes back to the module's 5-tuple layout.
    return (ya1.reshape(B, T, O8), ya2.reshape(B, T, O8),
            yb1.reshape(B, T, O8), yb2.reshape(B, T, O8),
            y2d.reshape(B, T, 2, O4))


# ---------------------------------------------------------------------------
# Pure-JAX f32 reference (generic 8x8 basis, independent code path).
# ---------------------------------------------------------------------------
def mlp_d8_reference(xs, params):
    x_a1, x_a2, x_b1, x_b2, x_2d = xs
    H8 = params["w1_a1"].shape[0]
    M = np.asarray(_M, dtype=np.float32)

    ha1 = x_a1 @ params["w1_a1"].T + params["b1_a1"]
    ha2 = x_a2 @ params["w1_a2"].T
    hb1 = x_b1 @ params["w1_b1"].T
    hb2 = x_b2 @ params["w1_b2"].T
    he = x_2d @ params["w1_e"].T
    c = [ha1, ha2, hb1, hb2,
         he[..., 0, :H8], he[..., 1, :H8], he[..., 0, H8:], he[..., 1, H8:]]
    reg = [_gelu(sum(float(M[g, i]) * c[i] for i in range(8))) for g in range(8)]
    gc = [sum(float(M[g, i]) * reg[g] for g in range(8)) for i in range(8)]

    ya1 = gc[0] @ params["w2_a1"].T + params["b2_a1"]
    ya2 = gc[1] @ params["w2_a2"].T
    yb1 = gc[2] @ params["w2_b1"].T
    yb2 = gc[3] @ params["w2_b2"].T
    gex = jnp.concatenate([gc[4], gc[6]], axis=-1)
    gey = jnp.concatenate([gc[5], gc[7]], axis=-1)
    y2d = jnp.stack([gex @ params["w2_e"].T, gey @ params["w2_e"].T], axis=-2)
    return ya1, ya2, yb1, yb2, y2d


if __name__ == "__main__":
    # small shapes: batch=2, seq=8, in_features=64, hidden=128, out=64
    B, T = 2, 8
    C, H, O = 64, 128, 64

    key = jax.random.PRNGKey(0)
    kx, kp = jax.random.split(key)
    kxs = jax.random.split(kx, 5)
    xs = (
        jax.random.normal(kxs[0], (B, T, C // 8), jnp.float32),      # A1
        jax.random.normal(kxs[1], (B, T, C // 8), jnp.float32),      # A2
        jax.random.normal(kxs[2], (B, T, C // 8), jnp.float32),      # B1
        jax.random.normal(kxs[3], (B, T, C // 8), jnp.float32),      # B2
        jax.random.normal(kxs[4], (B, T, 2, C // 4), jnp.float32),   # E (2-dim)
    )
    params = init_mlp_d8_params(kp, C, H, O)

    ref = mlp_d8_reference(xs, params)

    # default path: bf16 MXU + bf16 GeluD8 elementwise (v6e/v7x recipe)
    out_bf16 = jax.block_until_ready(mlp_d8_forward(xs, params))
    # f32 path (compute + elementwise in f32) for a tight numerical check
    out_f32 = jax.block_until_ready(
        mlp_d8_forward(xs, params, compute_dtype=jnp.float32))

    for o, r in zip(out_f32, ref):
        assert o.shape == r.shape and o.dtype == r.dtype
        err = float(jnp.max(jnp.abs(o - r)))
        if not err < 2e-3:
            raise AssertionError(f"f32 mismatch vs reference: max abs err {err}")

    for o, r in zip(out_bf16, ref):
        assert o.shape == r.shape
        scale = float(jnp.max(jnp.abs(r))) + 1e-6
        rel = float(jnp.max(jnp.abs(o - r))) / scale
        if not rel < 4e-2:
            raise AssertionError(f"bf16 mismatch vs reference: max rel err {rel}")

    print("KERNEL_OK")
</pallas_src>

<mosaic_0001>
module attributes {stable_mosaic.version = 11 : i64} {
  func.func @_mlp_d8_kernel(%arg0: i32, %arg1: memref<8x8xf32, #tpu.memory_space<vmem>>, %arg2: memref<8x8xf32, #tpu.memory_space<vmem>>, %arg3: memref<8x8xf32, #tpu.memory_space<vmem>>, %arg4: memref<8x8xf32, #tpu.memory_space<vmem>>, %arg5: memref<8x32xf32, #tpu.memory_space<vmem>>, %arg6: memref<8x16xbf16, #tpu.memory_space<vmem>>, %arg7: memref<8x16xbf16, #tpu.memory_space<vmem>>, %arg8: memref<8x16xbf16, #tpu.memory_space<vmem>>, %arg9: memref<8x16xbf16, #tpu.memory_space<vmem>>, %arg10: memref<16x32xbf16, #tpu.memory_space<vmem>>, %arg11: memref<1x16xf32, #tpu.memory_space<vmem>>, %arg12: memref<16x8xbf16, #tpu.memory_space<vmem>>, %arg13: memref<16x8xbf16, #tpu.memory_space<vmem>>, %arg14: memref<16x8xbf16, #tpu.memory_space<vmem>>, %arg15: memref<16x8xbf16, #tpu.memory_space<vmem>>, %arg16: memref<32x16xbf16, #tpu.memory_space<vmem>>, %arg17: memref<1x8xf32, #tpu.memory_space<vmem>>, %arg18: memref<8x8xf32, #tpu.memory_space<vmem>>, %arg19: memref<8x8xf32, #tpu.memory_space<vmem>>, %arg20: memref<8x8xf32, #tpu.memory_space<vmem>>, %arg21: memref<8x8xf32, #tpu.memory_space<vmem>>, %arg22: memref<8x32xf32, #tpu.memory_space<vmem>>) attributes {dimension_semantics = [#tpu.dimension_semantics<parallel>], iteration_bounds = array<i64: 2>, scalar_prefetch = 0 : i64, scratch_operands = 0 : i64, tpu.core_type = #tpu.core_type<tc>, window_params = [{transform_indices = @transform_0, window_bounds = array<i64: 8, 8>}, {transform_indices = @transform_1, window_bounds = array<i64: 8, 8>}, {transform_indices = @transform_2, window_bounds = array<i64: 8, 8>}, {transform_indices = @transform_3, window_bounds = array<i64: 8, 8>}, {transform_indices = @transform_4, window_bounds = array<i64: 8, 32>}, {pipeline_mode = #tpu.pipeline_mode<synchronous>, transform_indices = @transform_5, window_bounds = array<i64: 8, 16>}, {pipeline_mode = #tpu.pipeline_mode<synchronous>, transform_indices = @transform_6, window_bounds = array<i64: 8, 16>}, {pipeline_mode = #tpu.pipeline_mode<synchronous>, transform_indices = @transform_7, window_bounds = array<i64: 8, 16>}, {pipeline_mode = #tpu.pipeline_mode<synchronous>, transform_indices = @transform_8, window_bounds = array<i64: 8, 16>}, {pipeline_mode = #tpu.pipeline_mode<synchronous>, transform_indices = @transform_9, window_bounds = array<i64: 16, 32>}, {pipeline_mode = #tpu.pipeline_mode<synchronous>, transform_indices = @transform_10, window_bounds = array<i64: 1, 16>}, {pipeline_mode = #tpu.pipeline_mode<synchronous>, transform_indices = @transform_11, window_bounds = array<i64: 16, 8>}, {pipeline_mode = #tpu.pipeline_mode<synchronous>, transform_indices = @transform_12, window_bounds = array<i64: 16, 8>}, {pipeline_mode = #tpu.pipeline_mode<synchronous>, transform_indices = @transform_13, window_bounds = array<i64: 16, 8>}, {pipeline_mode = #tpu.pipeline_mode<synchronous>, transform_indices = @transform_14, window_bounds = array<i64: 16, 8>}, {pipeline_mode = #tpu.pipeline_mode<synchronous>, transform_indices = @transform_15, window_bounds = array<i64: 32, 16>}, {pipeline_mode = #tpu.pipeline_mode<synchronous>, transform_indices = @transform_16, window_bounds = array<i64: 1, 8>}, {transform_indices = @transform_17, window_bounds = array<i64: 8, 8>}, {transform_indices = @transform_18, window_bounds = array<i64: 8, 8>}, {transform_indices = @transform_19, window_bounds = array<i64: 8, 8>}, {transform_indices = @transform_20, window_bounds = array<i64: 8, 8>}, {transform_indices = @transform_21, window_bounds = array<i64: 8, 32>}]} {
    %c0 = arith.constant 0 : index
    %c0_0 = arith.constant 0 : index
    %0 = vector.load %arg1[%c0, %c0_0] : memref<8x8xf32, #tpu.memory_space<vmem>>, vector<8x8xf32>
    %1 = arith.truncf %0 : vector<8x8xf32> to vector<8x8xbf16>
    %c0_1 = arith.constant 0 : index
    %c0_2 = arith.constant 0 : index
    %2 = vector.load %arg2[%c0_1, %c0_2] : memref<8x8xf32, #tpu.memory_space<vmem>>, vector<8x8xf32>
    %3 = arith.truncf %2 : vector<8x8xf32> to vector<8x8xbf16>
    %c0_3 = arith.constant 0 : index
    %c0_4 = arith.constant 0 : index
    %4 = vector.load %arg3[%c0_3, %c0_4] : memref<8x8xf32, #tpu.memory_space<vmem>>, vector<8x8xf32>
    %5 = arith.truncf %4 : vector<8x8xf32> to vector<8x8xbf16>
    %c0_5 = arith.constant 0 : index
    %c0_6 = arith.constant 0 : index
    %6 = vector.load %arg4[%c0_5, %c0_6] : memref<8x8xf32, #tpu.memory_space<vmem>>, vector<8x8xf32>
    %7 = arith.truncf %6 : vector<8x8xf32> to vector<8x8xbf16>
    %c0_7 = arith.constant 0 : index
    %c0_8 = arith.constant 0 : index
    %8 = vector.load %arg5[%c0_7, %c0_8] : memref<8x32xf32, #tpu.memory_space<vmem>>, vector<8x32xf32>
    %9 = arith.truncf %8 : vector<8x32xf32> to vector<8x32xbf16>
    %10 = vector.extract_strided_slice %9 {offsets = [0, 0], sizes = [8, 16], strides = [1, 1]} : vector<8x32xbf16> to vector<8x16xbf16>
    %11 = vector.extract_strided_slice %9 {offsets = [0, 16], sizes = [8, 16], strides = [1, 1]} : vector<8x32xbf16> to vector<8x16xbf16>
    %12 = tpu.concatenate %10, %11 in 0 : vector<8x16xbf16>, vector<8x16xbf16> -> vector<16x16xbf16>
    %c0_9 = arith.constant 0 : index
    %c0_10 = arith.constant 0 : index
    %13 = vector.load %arg11[%c0_9, %c0_10] : memref<1x16xf32, #tpu.memory_space<vmem>>, vector<1x16xf32>
    %c0_11 = arith.constant 0 : index
    %c0_12 = arith.constant 0 : index
    %14 = vector.load %arg17[%c0_11, %c0_12] : memref<1x8xf32, #tpu.memory_space<vmem>>, vector<1x8xf32>
    %c0_13 = arith.constant 0 : index
    %c0_14 = arith.constant 0 : index
    %15 = vector.load %arg6[%c0_13, %c0_14] : memref<8x16xbf16, #tpu.memory_space<vmem>>, vector<8x16xbf16>
    %cst = arith.constant dense<0.000000e+00> : vector<8x16xf32>
    %16 = tpu.matmul %1, %15, %cst {dimension_numbers = #tpu.dot_dimension_numbers<[1], [0], [0], [1], [0, 0, 1, 1], [], []>} : vector<8x8xbf16>, vector<8x16xbf16>, vector<8x16xf32> -> vector<8x16xf32>
    %17 = vector.broadcast %13 : vector<1x16xf32> to vector<8x16xf32>
    %18 = arith.addf %16, %17 : vector<8x16xf32>
    %c0_15 = arith.constant 0 : index
    %c0_16 = arith.constant 0 : index
    %19 = vector.load %arg7[%c0_15, %c0_16] : memref<8x16xbf16, #tpu.memory_space<vmem>>, vector<8x16xbf16>
    %cst_17 = arith.constant dense<0.000000e+00> : vector<8x16xf32>
    %20 = tpu.matmul %3, %19, %cst_17 {dimension_numbers = #tpu.dot_dimension_numbers<[1], [0], [0], [1], [0, 0, 1, 1], [], []>} : vector<8x8xbf16>, vector<8x16xbf16>, vector<8x16xf32> -> vector<8x16xf32>
    %c0_18 = arith.constant 0 : index
    %c0_19 = arith.constant 0 : index
    %21 = vector.load %arg8[%c0_18, %c0_19] : memref<8x16xbf16, #tpu.memory_space<vmem>>, vector<8x16xbf16>
    %cst_20 = arith.constant dense<0.000000e+00> : vector<8x16xf32>
    %22 = tpu.matmul %5, %21, %cst_20 {dimension_numbers = #tpu.dot_dimension_numbers<[1], [0], [0], [1], [0, 0, 1, 1], [], []>} : vector<8x8xbf16>, vector<8x16xbf16>, vector<8x16xf32> -> vector<8x16xf32>
    %c0_21 = arith.constant 0 : index
    %c0_22 = arith.constant 0 : index
    %23 = vector.load %arg9[%c0_21, %c0_22] : memref<8x16xbf16, #tpu.memory_space<vmem>>, vector<8x16xbf16>
    %cst_23 = arith.constant dense<0.000000e+00> : vector<8x16xf32>
    %24 = tpu.matmul %7, %23, %cst_23 {dimension_numbers = #tpu.dot_dimension_numbers<[1], [0], [0], [1], [0, 0, 1, 1], [], []>} : vector<8x8xbf16>, vector<8x16xbf16>, vector<8x16xf32> -> vector<8x16xf32>
    %c0_24 = arith.constant 0 : index
    %c0_25 = arith.constant 0 : index
    %25 = vector.load %arg10[%c0_24, %c0_25] : memref<16x32xbf16, #tpu.memory_space<vmem>>, vector<16x32xbf16>
    %cst_26 = arith.constant dense<0.000000e+00> : vector<16x32xf32>
    %26 = tpu.matmul %12, %25, %cst_26 {dimension_numbers = #tpu.dot_dimension_numbers<[1], [0], [0], [1], [0, 0, 1, 1], [], []>} : vector<16x16xbf16>, vector<16x32xbf16>, vector<16x32xf32> -> vector<16x32xf32>
    %27 = arith.truncf %18 : vector<8x16xf32> to vector<8x16xbf16>
    %28 = arith.truncf %20 : vector<8x16xf32> to vector<8x16xbf16>
    %29 = arith.truncf %22 : vector<8x16xf32> to vector<8x16xbf16>
    %30 = arith.truncf %24 : vector<8x16xf32> to vector<8x16xbf16>
    %31 = arith.truncf %26 : vector<16x32xf32> to vector<16x32xbf16>
    %32 = vector.extract_strided_slice %31 {offsets = [0, 0], sizes = [8, 16], strides = [1, 1]} : vector<16x32xbf16> to vector<8x16xbf16>
    %33 = vector.extract_strided_slice %31 {offsets = [0, 16], sizes = [8, 16], strides = [1, 1]} : vector<16x32xbf16> to vector<8x16xbf16>
    %34 = vector.extract_strided_slice %31 {offsets = [8, 0], sizes = [8, 16], strides = [1, 1]} : vector<16x32xbf16> to vector<8x16xbf16>
    %35 = vector.extract_strided_slice %31 {offsets = [8, 16], sizes = [8, 16], strides = [1, 1]} : vector<16x32xbf16> to vector<8x16xbf16>
    %36 = arith.addf %27, %28 : vector<8x16xbf16>
    %cst_27 = arith.constant 3.535160e-01 : bf16
    %37 = vector.broadcast %cst_27 : bf16 to vector<8x16xbf16>
    %38 = arith.mulf %36, %37 : vector<8x16xbf16>
    %39 = arith.subf %27, %28 : vector<8x16xbf16>
    %cst_28 = arith.constant 3.535160e-01 : bf16
    %40 = vector.broadcast %cst_28 : bf16 to vector<8x16xbf16>
    %41 = arith.mulf %39, %40 : vector<8x16xbf16>
    %42 = arith.addf %29, %30 : vector<8x16xbf16>
    %cst_29 = arith.constant 3.535160e-01 : bf16
    %43 = vector.broadcast %cst_29 : bf16 to vector<8x16xbf16>
    %44 = arith.mulf %42, %43 : vector<8x16xbf16>
    %45 = arith.subf %29, %30 : vector<8x16xbf16>
    %cst_30 = arith.constant 3.535160e-01 : bf16
    %46 = vector.broadcast %cst_30 : bf16 to vector<8x16xbf16>
    %47 = arith.mulf %45, %46 : vector<8x16xbf16>
    %48 = arith.addf %38, %44 : vector<8x16xbf16>
    %49 = arith.subf %38, %44 : vector<8x16xbf16>
    %50 = arith.addf %41, %47 : vector<8x16xbf16>
    %51 = arith.subf %41, %47 : vector<8x16xbf16>
    %52 = arith.addf %32, %35 : vector<8x16xbf16>
    %cst_31 = arith.constant 5.000000e-01 : bf16
    %53 = vector.broadcast %cst_31 : bf16 to vector<8x16xbf16>
    %54 = arith.mulf %53, %52 : vector<8x16xbf16>
    %55 = arith.subf %34, %33 : vector<8x16xbf16>
    %cst_32 = arith.constant 5.000000e-01 : bf16
    %56 = vector.broadcast %cst_32 : bf16 to vector<8x16xbf16>
    %57 = arith.mulf %56, %55 : vector<8x16xbf16>
    %58 = arith.subf %32, %35 : vector<8x16xbf16>
    %cst_33 = arith.constant 5.000000e-01 : bf16
    %59 = vector.broadcast %cst_33 : bf16 to vector<8x16xbf16>
    %60 = arith.mulf %59, %58 : vector<8x16xbf16>
    %61 = arith.addf %34, %33 : vector<8x16xbf16>
    %cst_34 = arith.constant 5.000000e-01 : bf16
    %62 = vector.broadcast %cst_34 : bf16 to vector<8x16xbf16>
    %63 = arith.mulf %62, %61 : vector<8x16xbf16>
    %64 = arith.addf %48, %54 : vector<8x16xbf16>
    %65 = arith.mulf %64, %64 : vector<8x16xbf16>
    %66 = arith.mulf %64, %65 : vector<8x16xbf16>
    %cst_35 = arith.constant 4.467770e-02 : bf16
    %67 = vector.broadcast %cst_35 : bf16 to vector<8x16xbf16>
    %68 = arith.mulf %67, %66 : vector<8x16xbf16>
    %69 = arith.addf %64, %68 : vector<8x16xbf16>
    %cst_36 = arith.constant 7.968750e-01 : bf16
    %70 = vector.broadcast %cst_36 : bf16 to vector<8x16xbf16>
    %71 = arith.mulf %70, %69 : vector<8x16xbf16>
    %72 = math.tanh %71 : vector<8x16xbf16>
    %cst_37 = arith.constant 1.000000e+00 : bf16
    %73 = vector.broadcast %cst_37 : bf16 to vector<8x16xbf16>
    %74 = arith.addf %73, %72 : vector<8x16xbf16>
    %cst_38 = arith.constant 5.000000e-01 : bf16
    %75 = vector.broadcast %cst_38 : bf16 to vector<8x16xbf16>
    %76 = arith.mulf %75, %74 : vector<8x16xbf16>
    %77 = arith.mulf %64, %76 : vector<8x16xbf16>
    %78 = arith.addf %49, %57 : vector<8x16xbf16>
    %79 = arith.mulf %78, %78 : vector<8x16xbf16>
    %80 = arith.mulf %78, %79 : vector<8x16xbf16>
    %cst_39 = arith.constant 4.467770e-02 : bf16
    %81 = vector.broadcast %cst_39 : bf16 to vector<8x16xbf16>
    %82 = arith.mulf %81, %80 : vector<8x16xbf16>
    %83 = arith.addf %78, %82 : vector<8x16xbf16>
    %cst_40 = arith.constant 7.968750e-01 : bf16
    %84 = vector.broadcast %cst_40 : bf16 to vector<8x16xbf16>
    %85 = arith.mulf %84, %83 : vector<8x16xbf16>
    %86 = math.tanh %85 : vector<8x16xbf16>
    %cst_41 = arith.constant 1.000000e+00 : bf16
    %87 = vector.broadcast %cst_41 : bf16 to vector<8x16xbf16>
    %88 = arith.addf %87, %86 : vector<8x16xbf16>
    %cst_42 = arith.constant 5.000000e-01 : bf16
    %89 = vector.broadcast %cst_42 : bf16 to vector<8x16xbf16>
    %90 = arith.mulf %89, %88 : vector<8x16xbf16>
    %91 = arith.mulf %78, %90 : vector<8x16xbf16>
    %92 = arith.subf %48, %54 : vector<8x16xbf16>
    %93 = arith.mulf %92, %92 : vector<8x16xbf16>
    %94 = arith.mulf %92, %93 : vector<8x16xbf16>
    %cst_43 = arith.constant 4.467770e-02 : bf16
    %95 = vector.broadcast %cst_43 : bf16 to vector<8x16xbf16>
    %96 = arith.mulf %95, %94 : vector<8x16xbf16>
    %97 = arith.addf %92, %96 : vector<8x16xbf16>
    %cst_44 = arith.constant 7.968750e-01 : bf16
    %98 = vector.broadcast %cst_44 : bf16 to vector<8x16xbf16>
    %99 = arith.mulf %98, %97 : vector<8x16xbf16>
    %100 = math.tanh %99 : vector<8x16xbf16>
    %cst_45 = arith.constant 1.000000e+00 : bf16
    %101 = vector.broadcast %cst_45 : bf16 to vector<8x16xbf16>
    %102 = arith.addf %101, %100 : vector<8x16xbf16>
    %cst_46 = arith.constant 5.000000e-01 : bf16
    %103 = vector.broadcast %cst_46 : bf16 to vector<8x16xbf16>
    %104 = arith.mulf %103, %102 : vector<8x16xbf16>
    %105 = arith.mulf %92, %104 : vector<8x16xbf16>
    %106 = arith.subf %49, %57 : vector<8x16xbf16>
    %107 = arith.mulf %106, %106 : vector<8x16xbf16>
    %108 = arith.mulf %106, %107 : vector<8x16xbf16>
    %cst_47 = arith.constant 4.467770e-02 : bf16
    %109 = vector.broadcast %cst_47 : bf16 to vector<8x16xbf16>
    %110 = arith.mulf %109, %108 : vector<8x16xbf16>
    %111 = arith.addf %106, %110 : vector<8x16xbf16>
    %cst_48 = arith.constant 7.968750e-01 : bf16
    %112 = vector.broadcast %cst_48 : bf16 to vector<8x16xbf16>
    %113 = arith.mulf %112, %111 : vector<8x16xbf16>
    %114 = math.tanh %113 : vector<8x16xbf16>
    %cst_49 = arith.constant 1.000000e+00 : bf16
    %115 = vector.broadcast %cst_49 : bf16 to vector<8x16xbf16>
    %116 = arith.addf %115, %114 : vector<8x16xbf16>
    %cst_50 = arith.constant 5.000000e-01 : bf16
    %117 = vector.broadcast %cst_50 : bf16 to vector<8x16xbf16>
    %118 = arith.mulf %117, %116 : vector<8x16xbf16>
    %119 = arith.mulf %106, %118 : vector<8x16xbf16>
    %120 = arith.addf %50, %60 : vector<8x16xbf16>
    %121 = arith.mulf %120, %120 : vector<8x16xbf16>
    %122 = arith.mulf %120, %121 : vector<8x16xbf16>
    %cst_51 = arith.constant 4.467770e-02 : bf16
    %123 = vector.broadcast %cst_51 : bf16 to vector<8x16xbf16>
    %124 = arith.mulf %123, %122 : vector<8x16xbf16>
    %125 = arith.addf %120, %124 : vector<8x16xbf16>
    %cst_52 = arith.constant 7.968750e-01 : bf16
    %126 = vector.broadcast %cst_52 : bf16 to vector<8x16xbf16>
    %127 = arith.mulf %126, %125 : vector<8x16xbf16>
    %128 = math.tanh %127 : vector<8x16xbf16>
    %cst_53 = arith.constant 1.000000e+00 : bf16
    %129 = vector.broadcast %cst_53 : bf16 to vector<8x16xbf16>
    %130 = arith.addf %129, %128 : vector<8x16xbf16>
    %cst_54 = arith.constant 5.000000e-01 : bf16
    %131 = vector.broadcast %cst_54 : bf16 to vector<8x16xbf16>
    %132 = arith.mulf %131, %130 : vector<8x16xbf16>
    %133 = arith.mulf %120, %132 : vector<8x16xbf16>
    %134 = arith.addf %51, %63 : vector<8x16xbf16>
    %135 = arith.mulf %134, %134 : vector<8x16xbf16>
    %136 = arith.mulf %134, %135 : vector<8x16xbf16>
    %cst_55 = arith.constant 4.467770e-02 : bf16
    %137 = vector.broadcast %cst_55 : bf16 to vector<8x16xbf16>
    %138 = arith.mulf %137, %136 : vector<8x16xbf16>
    %139 = arith.addf %134, %138 : vector<8x16xbf16>
    %cst_56 = arith.constant 7.968750e-01 : bf16
    %140 = vector.broadcast %cst_56 : bf16 to vector<8x16xbf16>
    %141 = arith.mulf %140, %139 : vector<8x16xbf16>
    %142 = math.tanh %141 : vector<8x16xbf16>
    %cst_57 = arith.constant 1.000000e+00 : bf16
    %143 = vector.broadcast %cst_57 : bf16 to vector<8x16xbf16>
    %144 = arith.addf %143, %142 : vector<8x16xbf16>
    %cst_58 = arith.constant 5.000000e-01 : bf16
    %145 = vector.broadcast %cst_58 : bf16 to vector<8x16xbf16>
    %146 = arith.mulf %145, %144 : vector<8x16xbf16>
    %147 = arith.mulf %134, %146 : vector<8x16xbf16>
    %148 = arith.subf %50, %60 : vector<8x16xbf16>
    %149 = arith.mulf %148, %148 : vector<8x16xbf16>
    %150 = arith.mulf %148, %149 : vector<8x16xbf16>
    %cst_59 = arith.constant 4.467770e-02 : bf16
    %151 = vector.broadcast %cst_59 : bf16 to vector<8x16xbf16>
    %152 = arith.mulf %151, %150 : vector<8x16xbf16>
    %153 = arith.addf %148, %152 : vector<8x16xbf16>
    %cst_60 = arith.constant 7.968750e-01 : bf16
    %154 = vector.broadcast %cst_60 : bf16 to vector<8x16xbf16>
    %155 = arith.mulf %154, %153 : vector<8x16xbf16>
    %156 = math.tanh %155 : vector<8x16xbf16>
    %cst_61 = arith.constant 1.000000e+00 : bf16
    %157 = vector.broadcast %cst_61 : bf16 to vector<8x16xbf16>
    %158 = arith.addf %157, %156 : vector<8x16xbf16>
    %cst_62 = arith.constant 5.000000e-01 : bf16
    %159 = vector.broadcast %cst_62 : bf16 to vector<8x16xbf16>
    %160 = arith.mulf %159, %158 : vector<8x16xbf16>
    %161 = arith.mulf %148, %160 : vector<8x16xbf16>
    %162 = arith.subf %51, %63 : vector<8x16xbf16>
    %163 = arith.mulf %162, %162 : vector<8x16xbf16>
    %164 = arith.mulf %162, %163 : vector<8x16xbf16>
    %cst_63 = arith.constant 4.467770e-02 : bf16
    %165 = vector.broadcast %cst_63 : bf16 to vector<8x16xbf16>
    %166 = arith.mulf %165, %164 : vector<8x16xbf16>
    %167 = arith.addf %162, %166 : vector<8x16xbf16>
    %cst_64 = arith.constant 7.968750e-01 : bf16
    %168 = vector.broadcast %cst_64 : bf16 to vector<8x16xbf16>
    %169 = arith.mulf %168, %167 : vector<8x16xbf16>
    %170 = math.tanh %169 : vector<8x16xbf16>
    %cst_65 = arith.constant 1.000000e+00 : bf16
    %171 = vector.broadcast %cst_65 : bf16 to vector<8x16xbf16>
    %172 = arith.addf %171, %170 : vector<8x16xbf16>
    %cst_66 = arith.constant 5.000000e-01 : bf16
    %173 = vector.broadcast %cst_66 : bf16 to vector<8x16xbf16>
    %174 = arith.mulf %173, %172 : vector<8x16xbf16>
    %175 = arith.mulf %162, %174 : vector<8x16xbf16>
    %176 = arith.addf %77, %105 : vector<8x16xbf16>
    %177 = arith.subf %77, %105 : vector<8x16xbf16>
    %178 = arith.addf %91, %119 : vector<8x16xbf16>
    %179 = arith.subf %91, %119 : vector<8x16xbf16>
    %180 = arith.addf %133, %161 : vector<8x16xbf16>
    %181 = arith.subf %133, %161 : vector<8x16xbf16>
    %182 = arith.addf %147, %175 : vector<8x16xbf16>
    %183 = arith.subf %147, %175 : vector<8x16xbf16>
    %184 = arith.addf %176, %178 : vector<8x16xbf16>
    %cst_67 = arith.constant 3.535160e-01 : bf16
    %185 = vector.broadcast %cst_67 : bf16 to vector<8x16xbf16>
    %186 = arith.mulf %184, %185 : vector<8x16xbf16>
    %187 = arith.subf %176, %178 : vector<8x16xbf16>
    %cst_68 = arith.constant 3.535160e-01 : bf16
    %188 = vector.broadcast %cst_68 : bf16 to vector<8x16xbf16>
    %189 = arith.mulf %187, %188 : vector<8x16xbf16>
    %190 = arith.addf %180, %182 : vector<8x16xbf16>
    %cst_69 = arith.constant 3.535160e-01 : bf16
    %191 = vector.broadcast %cst_69 : bf16 to vector<8x16xbf16>
    %192 = arith.mulf %190, %191 : vector<8x16xbf16>
    %193 = arith.subf %180, %182 : vector<8x16xbf16>
    %cst_70 = arith.constant 3.535160e-01 : bf16
    %194 = vector.broadcast %cst_70 : bf16 to vector<8x16xbf16>
    %195 = arith.mulf %193, %194 : vector<8x16xbf16>
    %196 = arith.addf %186, %192 : vector<8x16xbf16>
    %197 = arith.subf %186, %192 : vector<8x16xbf16>
    %198 = arith.addf %189, %195 : vector<8x16xbf16>
    %199 = arith.subf %189, %195 : vector<8x16xbf16>
    %200 = arith.addf %177, %181 : vector<8x16xbf16>
    %cst_71 = arith.constant 5.000000e-01 : bf16
    %201 = vector.broadcast %cst_71 : bf16 to vector<8x16xbf16>
    %202 = arith.mulf %201, %200 : vector<8x16xbf16>
    %203 = arith.addf %179, %183 : vector<8x16xbf16>
    %cst_72 = arith.constant 5.000000e-01 : bf16
    %204 = vector.broadcast %cst_72 : bf16 to vector<8x16xbf16>
    %205 = arith.mulf %204, %203 : vector<8x16xbf16>
    %206 = arith.subf %183, %179 : vector<8x16xbf16>
    %cst_73 = arith.constant 5.000000e-01 : bf16
    %207 = vector.broadcast %cst_73 : bf16 to vector<8x16xbf16>
    %208 = arith.mulf %207, %206 : vector<8x16xbf16>
    %209 = arith.subf %177, %181 : vector<8x16xbf16>
    %cst_74 = arith.constant 5.000000e-01 : bf16
    %210 = vector.broadcast %cst_74 : bf16 to vector<8x16xbf16>
    %211 = arith.mulf %210, %209 : vector<8x16xbf16>
    %c0_75 = arith.constant 0 : index
    %c0_76 = arith.constant 0 : index
    %212 = vector.load %arg12[%c0_75, %c0_76] : memref<16x8xbf16, #tpu.memory_space<vmem>>, vector<16x8xbf16>
    %cst_77 = arith.constant dense<0.000000e+00> : vector<8x8xf32>
    %213 = tpu.matmul %196, %212, %cst_77 {dimension_numbers = #tpu.dot_dimension_numbers<[1], [0], [0], [1], [0, 0, 1, 1], [], []>} : vector<8x16xbf16>, vector<16x8xbf16>, vector<8x8xf32> -> vector<8x8xf32>
    %214 = vector.broadcast %14 : vector<1x8xf32> to vector<8x8xf32>
    %215 = arith.addf %213, %214 : vector<8x8xf32>
    %c0_78 = arith.constant 0 : index
    %c0_79 = arith.constant 0 : index
    %216 = vector.load %arg13[%c0_78, %c0_79] : memref<16x8xbf16, #tpu.memory_space<vmem>>, vector<16x8xbf16>
    %cst_80 = arith.constant dense<0.000000e+00> : vector<8x8xf32>
    %217 = tpu.matmul %197, %216, %cst_80 {dimension_numbers = #tpu.dot_dimension_numbers<[1], [0], [0], [1], [0, 0, 1, 1], [], []>} : vector<8x16xbf16>, vector<16x8xbf16>, vector<8x8xf32> -> vector<8x8xf32>
    %c0_81 = arith.constant 0 : index
    %c0_82 = arith.constant 0 : index
    %218 = vector.load %arg14[%c0_81, %c0_82] : memref<16x8xbf16, #tpu.memory_space<vmem>>, vector<16x8xbf16>
    %cst_83 = arith.constant dense<0.000000e+00> : vector<8x8xf32>
    %219 = tpu.matmul %198, %218, %cst_83 {dimension_numbers = #tpu.dot_dimension_numbers<[1], [0], [0], [1], [0, 0, 1, 1], [], []>} : vector<8x16xbf16>, vector<16x8xbf16>, vector<8x8xf32> -> vector<8x8xf32>
    %c0_84 = arith.constant 0 : index
    %c0_85 = arith.constant 0 : index
    %220 = vector.load %arg15[%c0_84, %c0_85] : memref<16x8xbf16, #tpu.memory_space<vmem>>, vector<16x8xbf16>
    %cst_86 = arith.constant dense<0.000000e+00> : vector<8x8xf32>
    %221 = tpu.matmul %199, %220, %cst_86 {dimension_numbers = #tpu.dot_dimension_numbers<[1], [0], [0], [1], [0, 0, 1, 1], [], []>} : vector<8x16xbf16>, vector<16x8xbf16>, vector<8x8xf32> -> vector<8x8xf32>
    %222 = tpu.concatenate %202, %208 in 1 : vector<8x16xbf16>, vector<8x16xbf16> -> vector<8x32xbf16>
    %223 = tpu.concatenate %205, %211 in 1 : vector<8x16xbf16>, vector<8x16xbf16> -> vector<8x32xbf16>
    %224 = tpu.concatenate %222, %223 in 0 : vector<8x32xbf16>, vector<8x32xbf16> -> vector<16x32xbf16>
    %c0_87 = arith.constant 0 : index
    %c0_88 = arith.constant 0 : index
    %225 = vector.load %arg16[%c0_87, %c0_88] : memref<32x16xbf16, #tpu.memory_space<vmem>>, vector<32x16xbf16>
    %cst_89 = arith.constant dense<0.000000e+00> : vector<16x16xf32>
    %226 = tpu.matmul %224, %225, %cst_89 {dimension_numbers = #tpu.dot_dimension_numbers<[1], [0], [0], [1], [0, 0, 1, 1], [], []>} : vector<16x32xbf16>, vector<32x16xbf16>, vector<16x16xf32> -> vector<16x16xf32>
    %c0_90 = arith.constant 0 : index
    %c0_91 = arith.constant 0 : index
    %227 = vector.load %arg18[%c0_90, %c0_91] : memref<8x8xf32, #tpu.memory_space<vmem>>, vector<8x8xf32>
    tpu.vector_store %arg18[%c0_90, %c0_91], %215 {strides = array<i32>} : memref<8x8xf32, #tpu.memory_space<vmem>>, vector<8x8xf32>,
    %c0_92 = arith.constant 0 : index
    %c0_93 = arith.constant 0 : index
    %228 = vector.load %arg19[%c0_92, %c0_93] : memref<8x8xf32, #tpu.memory_space<vmem>>, vector<8x8xf32>
    tpu.vector_store %arg19[%c0_92, %c0_93], %217 {strides = array<i32>} : memref<8x8xf32, #tpu.memory_space<vmem>>, vector<8x8xf32>,
    %c0_94 = arith.constant 0 : index
    %c0_95 = arith.constant 0 : index
    %229 = vector.load %arg20[%c0_94, %c0_95] : memref<8x8xf32, #tpu.memory_space<vmem>>, vector<8x8xf32>
    tpu.vector_store %arg20[%c0_94, %c0_95], %219 {strides = array<i32>} : memref<8x8xf32, #tpu.memory_space<vmem>>, vector<8x8xf32>,
    %c0_96 = arith.constant 0 : index
    %c0_97 = arith.constant 0 : index
    %230 = vector.load %arg21[%c0_96, %c0_97] : memref<8x8xf32, #tpu.memory_space<vmem>>, vector<8x8xf32>
    tpu.vector_store %arg21[%c0_96, %c0_97], %221 {strides = array<i32>} : memref<8x8xf32, #tpu.memory_space<vmem>>, vector<8x8xf32>,
    %231 = vector.extract_strided_slice %226 {offsets = [0, 0], sizes = [8, 16], strides = [1, 1]} : vector<16x16xf32> to vector<8x16xf32>
    %232 = vector.extract_strided_slice %226 {offsets = [8, 0], sizes = [8, 16], strides = [1, 1]} : vector<16x16xf32> to vector<8x16xf32>
    %233 = tpu.concatenate %231, %232 in 1 : vector<8x16xf32>, vector<8x16xf32> -> vector<8x32xf32>
    %c0_98 = arith.constant 0 : index
    %c0_99 = arith.constant 0 : index
    %234 = vector.load %arg22[%c0_98, %c0_99] : memref<8x32xf32, #tpu.memory_space<vmem>>, vector<8x32xf32>
    tpu.vector_store %arg22[%c0_98, %c0_99], %233 {strides = array<i32>} : memref<8x32xf32, #tpu.memory_space<vmem>>, vector<8x32xf32>,
    return
  }
  func.func @transform_0(%arg0: i32) -> (i32, i32) {
    %c0_i32 = arith.constant 0 : i32
    %c0_i32_0 = arith.constant 0 : i32
    return %arg0, %c0_i32 : i32, i32
  }
  func.func @transform_1(%arg0: i32) -> (i32, i32) {
    %c0_i32 = arith.constant 0 : i32
    %c0_i32_0 = arith.constant 0 : i32
    return %arg0, %c0_i32 : i32, i32
  }
  func.func @transform_2(%arg0: i32) -> (i32, i32) {
    %c0_i32 = arith.constant 0 : i32
    %c0_i32_0 = arith.constant 0 : i32
    return %arg0, %c0_i32 : i32, i32
  }
  func.func @transform_3(%arg0: i32) -> (i32, i32) {
    %c0_i32 = arith.constant 0 : i32
    %c0_i32_0 = arith.constant 0 : i32
    return %arg0, %c0_i32 : i32, i32
  }
  func.func @transform_4(%arg0: i32) -> (i32, i32) {
    %c0_i32 = arith.constant 0 : i32
    %c0_i32_0 = arith.constant 0 : i32
    return %arg0, %c0_i32 : i32, i32
  }
  func.func @transform_5(%arg0: i32) -> (i32, i32) {
    %c0_i32 = arith.constant 0 : i32
    %c0_i32_0 = arith.constant 0 : i32
    %c0_i32_1 = arith.constant 0 : i32
    return %c0_i32, %c0_i32_0 : i32, i32
  }
  func.func @transform_6(%arg0: i32) -> (i32, i32) {
    %c0_i32 = arith.constant 0 : i32
    %c0_i32_0 = arith.constant 0 : i32
    %c0_i32_1 = arith.constant 0 : i32
    return %c0_i32, %c0_i32_0 : i32, i32
  }
  func.func @transform_7(%arg0: i32) -> (i32, i32) {
    %c0_i32 = arith.constant 0 : i32
    %c0_i32_0 = arith.constant 0 : i32
    %c0_i32_1 = arith.constant 0 : i32
    return %c0_i32, %c0_i32_0 : i32, i32
  }
  func.func @transform_8(%arg0: i32) -> (i32, i32) {
    %c0_i32 = arith.constant 0 : i32
    %c0_i32_0 = arith.constant 0 : i32
    %c0_i32_1 = arith.constant 0 : i32
    return %c0_i32, %c0_i32_0 : i32, i32
  }
  func.func @transform_9(%arg0: i32) -> (i32, i32) {
    %c0_i32 = arith.constant 0 : i32
    %c0_i32_0 = arith.constant 0 : i32
    %c0_i32_1 = arith.constant 0 : i32
    return %c0_i32, %c0_i32_0 : i32, i32
  }
  func.func @transform_10(%arg0: i32) -> (i32, i32) {
    %c0_i32 = arith.constant 0 : i32
    %c0_i32_0 = arith.constant 0 : i32
    %c0_i32_1 = arith.constant 0 : i32
    return %c0_i32, %c0_i32_0 : i32, i32
  }
  func.func @transform_11(%arg0: i32) -> (i32, i32) {
    %c0_i32 = arith.constant 0 : i32
    %c0_i32_0 = arith.constant 0 : i32
    %c0_i32_1 = arith.constant 0 : i32
    return %c0_i32, %c0_i32_0 : i32, i32
  }
  func.func @transform_12(%arg0: i32) -> (i32, i32) {
    %c0_i32 = arith.constant 0 : i32
    %c0_i32_0 = arith.constant 0 : i32
    %c0_i32_1 = arith.constant 0 : i32
    return %c0_i32, %c0_i32_0 : i32, i32
  }
  func.func @transform_13(%arg0: i32) -> (i32, i32) {
    %c0_i32 = arith.constant 0 : i32
    %c0_i32_0 = arith.constant 0 : i32
    %c0_i32_1 = arith.constant 0 : i32
    return %c0_i32, %c0_i32_0 : i32, i32
  }
  func.func @transform_14(%arg0: i32) -> (i32, i32) {
    %c0_i32 = arith.constant 0 : i32
    %c0_i32_0 = arith.constant 0 : i32
    %c0_i32_1 = arith.constant 0 : i32
    return %c0_i32, %c0_i32_0 : i32, i32
  }
  func.func @transform_15(%arg0: i32) -> (i32, i32) {
    %c0_i32 = arith.constant 0 : i32
    %c0_i32_0 = arith.constant 0 : i32
    %c0_i32_1 = arith.constant 0 : i32
    return %c0_i32, %c0_i32_0 : i32, i32
  }
  func.func @transform_16(%arg0: i32) -> (i32, i32) {
    %c0_i32 = arith.constant 0 : i32
    %c0_i32_0 = arith.constant 0 : i32
    %c0_i32_1 = arith.constant 0 : i32
    return %c0_i32, %c0_i32_0 : i32, i32
  }
  func.func @transform_17(%arg0: i32) -> (i32, i32) {
    %c0_i32 = arith.constant 0 : i32
    %c0_i32_0 = arith.constant 0 : i32
    return %arg0, %c0_i32 : i32, i32
  }
  func.func @transform_18(%arg0: i32) -> (i32, i32) {
    %c0_i32 = arith.constant 0 : i32
    %c0_i32_0 = arith.constant 0 : i32
    return %arg0, %c0_i32 : i32, i32
  }
  func.func @transform_19(%arg0: i32) -> (i32, i32) {
    %c0_i32 = arith.constant 0 : i32
    %c0_i32_0 = arith.constant 0 : i32
    return %arg0, %c0_i32 : i32, i32
  }
  func.func @transform_20(%arg0: i32) -> (i32, i32) {
    %c0_i32 = arith.constant 0 : i32
    %c0_i32_0 = arith.constant 0 : i32
    return %arg0, %c0_i32 : i32, i32
  }
  func.func @transform_21(%arg0: i32) -> (i32, i32) {
    %c0_i32 = arith.constant 0 : i32
    %c0_i32_0 = arith.constant 0 : i32
    return %arg0, %c0_i32 : i32, i32
  }
}

</mosaic_0001>

<llo_original>
// kernel: tpu_custom_call.1
$region0: #{tpu_custom_call.1}
  #allocation0 [shape = 'u32[]', space=smem, size = 0x4, offset = 0x4, fixed_abs, tag = 'smem constant byte address 0x4 - core index']
  #allocation1 [shape = 'u32[144,128]{1,0:T(1,128)}', space=vmem, size = 0x12000, scoped, tag = 'internal scratch']
  %s0 = inlined_call_operand.vmem [shape: f32[16,8], index: 0, kind: input, shape index: {}]
  %s1 = inlined_call_operand.vmem [shape: f32[16,8], index: 1, kind: input, shape index: {}]
  %s2 = inlined_call_operand.vmem [shape: f32[16,8], index: 2, kind: input, shape index: {}]
  %s3 = inlined_call_operand.vmem [shape: f32[16,8], index: 3, kind: input, shape index: {}]
  %s4 = inlined_call_operand.vmem [shape: f32[16,32], index: 4, kind: input, shape index: {}]
  %s5 = inlined_call_operand.vmem [shape: bf16[8,16], index: 5, kind: input, shape index: {}]
  %s6 = inlined_call_operand.vmem [shape: bf16[8,16], index: 6, kind: input, shape index: {}]
  %s7 = inlined_call_operand.vmem [shape: bf16[8,16], index: 7, kind: input, shape index: {}]
  %s8 = inlined_call_operand.vmem [shape: bf16[8,16], index: 8, kind: input, shape index: {}]
  %s9 = inlined_call_operand.vmem [shape: bf16[16,32], index: 9, kind: input, shape index: {}]
  %s10 = inlined_call_operand.vmem [shape: f32[1,16], index: 10, kind: input, shape index: {}]
  %s11 = inlined_call_operand.vmem [shape: bf16[16,8], index: 11, kind: input, shape index: {}]
  %s12 = inlined_call_operand.vmem [shape: bf16[16,8], index: 12, kind: input, shape index: {}]
  %s13 = inlined_call_operand.vmem [shape: bf16[16,8], index: 13, kind: input, shape index: {}]
  %s14 = inlined_call_operand.vmem [shape: bf16[16,8], index: 14, kind: input, shape index: {}]
  %s15 = inlined_call_operand.vmem [shape: bf16[32,16], index: 15, kind: input, shape index: {}]
  %s16 = inlined_call_operand.vmem [shape: f32[1,8], index: 16, kind: input, shape index: {}]
  %s17 = inlined_call_operand.vmem [shape: f32[16,8], index: 17, kind: output, shape index: {0}]
  %s18 = inlined_call_operand.vmem [shape: f32[16,8], index: 18, kind: output, shape index: {1}]
  %s19 = inlined_call_operand.vmem [shape: f32[16,8], index: 19, kind: output, shape index: {2}]
  %s20 = inlined_call_operand.vmem [shape: f32[16,8], index: 20, kind: output, shape index: {3}]
  %s21 = inlined_call_operand.hbm [shape: f32[16,32], index: 21, kind: output, shape index: {4}]
  %22 = xla_tuple %s17, %s18, %s19, %s20, %s21
  %s23 = sld [smem:[#allocation0]]
  $region133: #{tpu_custom_call.1} parent=0
    _
  %s25 = ssub.s32 1, %s23
  %s26 = scalar_select 0, %s25, %s23
  $region1: #{tpu_custom_call.1} parent=0
    #allocation2 [shape = 'u8[8192]{0}', space=vmem, size = 0x2000, scoped, tag = 'output window, operand 4']
    #allocation3 [shape = 's32[2]{0}', space=sflag, size = 0x8, scoped, tag = 'scoped memory for tpu_custom_call.1']
    %27 = vsyncpa [#allocation3], 0
    %s28 = scalar_lea.sflag [#allocation3], 1
    %29 = vsyncpa %s28, 0
    loop: start=0, step=1, limit=4
    $region2: #{tpu_custom_call.1} parent=1 // loop_pre_header
      _
    $region3: #{tpu_custom_call.1} parent=1 // loop_header
      %s31 = sphi 0, %s35
      %p32 = scmp.ge.s32.totalorder %s31, 4
      %s41 = sphi 0, %s43
      %s44 = sphi 0, %s41
      %s45 = sphi 0, %s44
      %s61 = sphi 0, %s45
      %s67 = sphi 0, %s69
      %s70 = sphi 0, %s67
      %s71 = sphi 0, %s70
      %s87 = sphi 0, %s71
      %s93 = sphi 0, %s95
      %s96 = sphi 0, %s93
      %s97 = sphi 0, %s96
      %s113 = sphi 0, %s97
      %s119 = sphi 0, %s121
      %s122 = sphi 0, %s119
      %s123 = sphi 0, %s122
      %s139 = sphi 0, %s123
      %s145 = sphi 0, %s147
      %s148 = sphi 0, %s145
      %s149 = sphi 0, %s148
      %s165 = sphi 0, %s149
      %s169 = sphi 0, %s169
      %s171 = sphi 0, %s169
      %s172 = sphi 0, %s171
      %s186 = sphi 0, %s172
      %s190 = sphi 0, %s190
      %s192 = sphi 0, %s190
      %s193 = sphi 0, %s192
      %s207 = sphi 0, %s193
      %s211 = sphi 0, %s211
      %s213 = sphi 0, %s211
      %s214 = sphi 0, %s213
      %s228 = sphi 0, %s214
      %s232 = sphi 0, %s232
      %s234 = sphi 0, %s232
      %s235 = sphi 0, %s234
      %s249 = sphi 0, %s235
      %s253 = sphi 0, %s253
      %s255 = sphi 0, %s253
      %s256 = sphi 0, %s255
      %s270 = sphi 0, %s256
      %s274 = sphi 0, %s274
      %s276 = sphi 0, %s274
      %s277 = sphi 0, %s276
      %s291 = sphi 0, %s277
      %s295 = sphi 0, %s295
      %s297 = sphi 0, %s295
      %s298 = sphi 0, %s297
      %s312 = sphi 0, %s298
      %s316 = sphi 0, %s316
      %s318 = sphi 0, %s316
      %s319 = sphi 0, %s318
      %s333 = sphi 0, %s319
      %s337 = sphi 0, %s337
      %s339 = sphi 0, %s337
      %s340 = sphi 0, %s339
      %s354 = sphi 0, %s340
      %s358 = sphi 0, %s358
      %s360 = sphi 0, %s358
      %s361 = sphi 0, %s360
      %s375 = sphi 0, %s361
      %s379 = sphi 0, %s379
      %s381 = sphi 0, %s379
      %s382 = sphi 0, %s381
      %s396 = sphi 0, %s382
      %s400 = sphi 0, %s400
      %s402 = sphi 0, %s400
      %s403 = sphi 0, %s402
      %s417 = sphi 0, %s403
      %s423 = sphi 0, %s425
      %s426 = sphi 0, %s423
      %s427 = sphi 0, %s426
      %s443 = sphi 0, %s427
      %s449 = sphi 0, %s451
      %s452 = sphi 0, %s449
      %s453 = sphi 0, %s452
      %s469 = sphi 0, %s453
      %s475 = sphi 0, %s477
      %s478 = sphi 0, %s475
      %s479 = sphi 0, %s478
      %s495 = sphi 0, %s479
      %s501 = sphi 0, %s503
      %s504 = sphi 0, %s501
      %s505 = sphi 0, %s504
      %s521 = sphi 0, %s505
      %s527 = sphi 0, %s529
      %s530 = sphi 0, %s527
      %s531 = sphi 0, %s530
      %s547 = sphi 0, %s531
    $region4: #{tpu_custom_call.1} parent=1 // loop_header_branch
      %34 = sbr.rel (%p32) target = $region8
    $region5: #{tpu_custom_call.1} parent=1 // loop_body
      %s36 = ssub.s32 %s31, 1
      %s37 = ssub.s32 %s31, 2
      %s38 = sadd.s32 %s31, 1
      %s39 = ssub.s32 %s31, %s38
      %p40 = scmp.eq.s32.totalorder %s39, 0
      %s42 = sadd.s32 %s41, 1
      %s43 = scalar_select %p40, %s41, %s42
      %p46 = pneg %p40
      %p47 = scmp.eq.s32.totalorder %s31, 1
      %p48 = por %p46, %p47
      %p49 = scmp.ne.s32.totalorder %s41, %s44
      %p50 = scmp.eq.s32.totalorder %s31, 0
      %p51 = por %p49, %p50
      %p52 = scmp.ne.s32.totalorder %s41, %s44
      %p53 = scmp.eq.s32.totalorder %s36, 1
      %p54 = por %p52, %p53
      %p55 = scmp.ne.s32.totalorder %s44, %s45
      %p56 = scmp.eq.s32.totalorder %s36, 0
      %p57 = por %p55, %p56
      %p58 = scmp.ne.s32.totalorder %s44, %s45
      %p59 = scmp.eq.s32.totalorder %s37, 1
      %p60 = por %p58, %p59
      %p62 = scmp.ne.s32.totalorder %s45, %s61
      %p63 = scmp.eq.s32.totalorder %s37, 0
      %p64 = por %p62, %p63
      %s65 = ssub.s32 %s31, %s38
      %p66 = scmp.eq.s32.totalorder %s65, 0
      %s68 = sadd.s32 %s67, 1
      %s69 = scalar_select %p66, %s67, %s68
      %p72 = pneg %p66
      %p73 = scmp.eq.s32.totalorder %s31, 1
      %p74 = por %p72, %p73
      %p75 = scmp.ne.s32.totalorder %s67, %s70
      %p76 = scmp.eq.s32.totalorder %s31, 0
      %p77 = por %p75, %p76
      %p78 = scmp.ne.s32.totalorder %s67, %s70
      %p79 = scmp.eq.s32.totalorder %s36, 1
      %p80 = por %p78, %p79
      %p81 = scmp.ne.s32.totalorder %s70, %s71
      %p82 = scmp.eq.s32.totalorder %s36, 0
      %p83 = por %p81, %p82
      %p84 = scmp.ne.s32.totalorder %s70, %s71
      %p85 = scmp.eq.s32.totalorder %s37, 1
      %p86 = por %p84, %p85
      %p88 = scmp.ne.s32.totalorder %s71, %s87
      %p89 = scmp.eq.s32.totalorder %s37, 0
      %p90 = por %p88, %p89
      %s91 = ssub.s32 %s31, %s38
      %p92 = scmp.eq.s32.totalorder %s91, 0
      %s94 = sadd.s32 %s93, 1
      %s95 = scalar_select %p92, %s93, %s94
      %p98 = pneg %p92
      %p99 = scmp.eq.s32.totalorder %s31, 1
      %p100 = por %p98, %p99
      %p101 = scmp.ne.s32.totalorder %s93, %s96
      %p102 = scmp.eq.s32.totalorder %s31, 0
      %p103 = por %p101, %p102
      %p104 = scmp.ne.s32.totalorder %s93, %s96
      %p105 = scmp.eq.s32.totalorder %s36, 1
      %p106 = por %p104, %p105
      %p107 = scmp.ne.s32.totalorder %s96, %s97
      %p108 = scmp.eq.s32.totalorder %s36, 0
      %p109 = por %p107, %p108
      %p110 = scmp.ne.s32.totalorder %s96, %s97
      %p111 = scmp.eq.s32.totalorder %s37, 1
      %p112 = por %p110, %p111
      %p114 = scmp.ne.s32.totalorder %s97, %s113
      %p115 = scmp.eq.s32.totalorder %s37, 0
      %p116 = por %p114, %p115
      %s117 = ssub.s32 %s31, %s38
      %p118 = scmp.eq.s32.totalorder %s117, 0
      %s120 = sadd.s32 %s119, 1
      %s121 = scalar_select %p118, %s119, %s120
      %p124 = pneg %p118
      %p125 = scmp.eq.s32.totalorder %s31, 1
      %p126 = por %p124, %p125
      %p127 = scmp.ne.s32.totalorder %s119, %s122
      %p128 = scmp.eq.s32.totalorder %s31, 0
      %p129 = por %p127, %p128
      %p130 = scmp.ne.s32.totalorder %s119, %s122
      %p131 = scmp.eq.s32.totalorder %s36, 1
      %p132 = por %p130, %p131
      %p133 = scmp.ne.s32.totalorder %s122, %s123
      %p134 = scmp.eq.s32.totalorder %s36, 0
      %p135 = por %p133, %p134
      %p136 = scmp.ne.s32.totalorder %s122, %s123
      %p137 = scmp.eq.s32.totalorder %s37, 1
      %p138 = por %p136, %p137
      %p140 = scmp.ne.s32.totalorder %s123, %s139
      %p141 = scmp.eq.s32.totalorder %s37, 0
      %p142 = por %p140, %p141
      %s143 = ssub.s32 %s31, %s38
      %p144 = scmp.eq.s32.totalorder %s143, 0
      %s146 = sadd.s32 %s145, 1
      %s147 = scalar_select %p144, %s145, %s146
      %p150 = pneg %p144
      %p151 = scmp.eq.s32.totalorder %s31, 1
      %p152 = por %p150, %p151
      %p153 = scmp.ne.s32.totalorder %s145, %s148
      %p154 = scmp.eq.s32.totalorder %s31, 0
      %p155 = por %p153, %p154
      %p156 = scmp.ne.s32.totalorder %s145, %s148
      %p157 = scmp.eq.s32.totalorder %s36, 1
      %p158 = por %p156, %p157
      %p159 = scmp.ne.s32.totalorder %s148, %s149
      %p160 = scmp.eq.s32.totalorder %s36, 0
      %p161 = por %p159, %p160
      %p162 = scmp.ne.s32.totalorder %s148, %s149
      %p163 = scmp.eq.s32.totalorder %s37, 1
      %p164 = por %p162, %p163
      %p166 = scmp.ne.s32.totalorder %s149, %s165
      %p167 = scmp.eq.s32.totalorder %s37, 0
      %p168 = por %p166, %p167
      %s170 = sadd.s32 %s169, 1
      %p173 = scmp.eq.s32.totalorder %s31, 1
      %p174 = scmp.ne.s32.totalorder %s169, %s171
      %p175 = scmp.eq.s32.totalorder %s31, 0
      %p176 = por %p174, %p175
      %p177 = scmp.ne.s32.totalorder %s169, %s171
      %p178 = scmp.eq.s32.totalorder %s36, 1
      %p179 = por %p177, %p178
      %p180 = scmp.ne.s32.totalorder %s171, %s172
      %p181 = scmp.eq.s32.totalorder %s36, 0
      %p182 = por %p180, %p181
      %p183 = scmp.ne.s32.totalorder %s171, %s172
      %p184 = scmp.eq.s32.totalorder %s37, 1
      %p185 = por %p183, %p184
      %p187 = scmp.ne.s32.totalorder %s172, %s186
      %p188 = scmp.eq.s32.totalorder %s37, 0
      %p189 = por %p187, %p188
      %s191 = sadd.s32 %s190, 1
      %p194 = scmp.eq.s32.totalorder %s31, 1
      %p195 = scmp.ne.s32.totalorder %s190, %s192
      %p196 = scmp.eq.s32.totalorder %s31, 0
      %p197 = por %p195, %p196
      %p198 = scmp.ne.s32.totalorder %s190, %s192
      %p199 = scmp.eq.s32.totalorder %s36, 1
      %p200 = por %p198, %p199
      %p201 = scmp.ne.s32.totalorder %s192, %s193
      %p202 = scmp.eq.s32.totalorder %s36, 0
      %p203 = por %p201, %p202
      %p204 = scmp.ne.s32.totalorder %s192, %s193
      %p205 = scmp.eq.s32.totalorder %s37, 1
      %p206 = por %p204, %p205
      %p208 = scmp.ne.s32.totalorder %s193, %s207
      %p209 = scmp.eq.s32.totalorder %s37, 0
      %p210 = por %p208, %p209
      %s212 = sadd.s32 %s211, 1
      %p215 = scmp.eq.s32.totalorder %s31, 1
      %p216 = scmp.ne.s32.totalorder %s211, %s213
      %p217 = scmp.eq.s32.totalorder %s31, 0
      %p218 = por %p216, %p217
      %p219 = scmp.ne.s32.totalorder %s211, %s213
      %p220 = scmp.eq.s32.totalorder %s36, 1
      %p221 = por %p219, %p220
      %p222 = scmp.ne.s32.totalorder %s213, %s214
      %p223 = scmp.eq.s32.totalorder %s36, 0
      %p224 = por %p222, %p223
      %p225 = scmp.ne.s32.totalorder %s213, %s214
      %p226 = scmp.eq.s32.totalorder %s37, 1
      %p227 = por %p225, %p226
      %p229 = scmp.ne.s32.totalorder %s214, %s228
      %p230 = scmp.eq.s32.totalorder %s37, 0
      %p231 = por %p229, %p230
      %s233 = sadd.s32 %s232, 1
      %p236 = scmp.eq.s32.totalorder %s31, 1
      %p237 = scmp.ne.s32.totalorder %s232, %s234
      %p238 = scmp.eq.s32.totalorder %s31, 0
      %p239 = por %p237, %p238
      %p240 = scmp.ne.s32.totalorder %s232, %s234
      %p241 = scmp.eq.s32.totalorder %s36, 1
      %p242 = por %p240, %p241
      %p243 = scmp.ne.s32.totalorder %s234, %s235
      %p244 = scmp.eq.s32.totalorder %s36, 0
      %p245 = por %p243, %p244
      %p246 = scmp.ne.s32.totalorder %s234, %s235
      %p247 = scmp.eq.s32.totalorder %s37, 1
      %p248 = por %p246, %p247
      %p250 = scmp.ne.s32.totalorder %s235, %s249
      %p251 = scmp.eq.s32.totalorder %s37, 0
      %p252 = por %p250, %p251
      %s254 = sadd.s32 %s253, 1
      %p257 = scmp.eq.s32.totalorder %s31, 1
      %p258 = scmp.ne.s32.totalorder %s253, %s255
      %p259 = scmp.eq.s32.totalorder %s31, 0
      %p260 = por %p258, %p259
      %p261 = scmp.ne.s32.totalorder %s253, %s255
      %p262 = scmp.eq.s32.totalorder %s36, 1
      %p263 = por %p261, %p262
      %p264 = scmp.ne.s32.totalorder %s255, %s256
      %p265 = scmp.eq.s32.totalorder %s36, 0
      %p266 = por %p264, %p265
      %p267 = scmp.ne.s32.totalorder %s255, %s256
      %p268 = scmp.eq.s32.totalorder %s37, 1
      %p269 = por %p267, %p268
      %p271 = scmp.ne.s32.totalorder %s256, %s270
      %p272 = scmp.eq.s32.totalorder %s37, 0
      %p273 = por %p271, %p272
      %s275 = sadd.s32 %s274, 1
      %p278 = scmp.eq.s32.totalorder %s31, 1
      %p279 = scmp.ne.s32.totalorder %s274, %s276
      %p280 = scmp.eq.s32.totalorder %s31, 0
      %p281 = por %p279, %p280
      %p282 = scmp.ne.s32.totalorder %s274, %s276
      %p283 = scmp.eq.s32.totalorder %s36, 1
      %p284 = por %p282, %p283
      %p285 = scmp.ne.s32.totalorder %s276, %s277
      %p286 = scmp.eq.s32.totalorder %s36, 0
      %p287 = por %p285, %p286
      %p288 = scmp.ne.s32.totalorder %s276, %s277
      %p289 = scmp.eq.s32.totalorder %s37, 1
      %p290 = por %p288, %p289
      %p292 = scmp.ne.s32.totalorder %s277, %s291
      %p293 = scmp.eq.s32.totalorder %s37, 0
      %p294 = por %p292, %p293
      %s296 = sadd.s32 %s295, 1
      %p299 = scmp.eq.s32.totalorder %s31, 1
      %p300 = scmp.ne.s32.totalorder %s295, %s297
      %p301 = scmp.eq.s32.totalorder %s31, 0
      %p302 = por %p300, %p301
      %p303 = scmp.ne.s32.totalorder %s295, %s297
      %p304 = scmp.eq.s32.totalorder %s36, 1
      %p305 = por %p303, %p304
      %p306 = scmp.ne.s32.totalorder %s297, %s298
      %p307 = scmp.eq.s32.totalorder %s36, 0
      %p308 = por %p306, %p307
      %p309 = scmp.ne.s32.totalorder %s297, %s298
      %p310 = scmp.eq.s32.totalorder %s37, 1
      %p311 = por %p309, %p310
      %p313 = scmp.ne.s32.totalorder %s298, %s312
      %p314 = scmp.eq.s32.totalorder %s37, 0
      %p315 = por %p313, %p314
      %s317 = sadd.s32 %s316, 1
      %p320 = scmp.eq.s32.totalorder %s31, 1
      %p321 = scmp.ne.s32.totalorder %s316, %s318
      %p322 = scmp.eq.s32.totalorder %s31, 0
      %p323 = por %p321, %p322
      %p324 = scmp.ne.s32.totalorder %s316, %s318
      %p325 = scmp.eq.s32.totalorder %s36, 1
      %p326 = por %p324, %p325
      %p327 = scmp.ne.s32.totalorder %s318, %s319
      %p328 = scmp.eq.s32.totalorder %s36, 0
      %p329 = por %p327, %p328
      %p330 = scmp.ne.s32.totalorder %s318, %s319
      %p331 = scmp.eq.s32.totalorder %s37, 1
      %p332 = por %p330, %p331
      %p334 = scmp.ne.s32.totalorder %s319, %s333
      %p335 = scmp.eq.s32.totalorder %s37, 0
      %p336 = por %p334, %p335
      %s338 = sadd.s32 %s337, 1
      %p341 = scmp.eq.s32.totalorder %s31, 1
      %p342 = scmp.ne.s32.totalorder %s337, %s339
      %p343 = scmp.eq.s32.totalorder %s31, 0
      %p344 = por %p342, %p343
      %p345 = scmp.ne.s32.totalorder %s337, %s339
      %p346 = scmp.eq.s32.totalorder %s36, 1
      %p347 = por %p345, %p346
      %p348 = scmp.ne.s32.totalorder %s339, %s340
      %p349 = scmp.eq.s32.totalorder %s36, 0
      %p350 = por %p348, %p349
      %p351 = scmp.ne.s32.totalorder %s339, %s340
      %p352 = scmp.eq.s32.totalorder %s37, 1
      %p353 = por %p351, %p352
      %p355 = scmp.ne.s32.totalorder %s340, %s354
      %p356 = scmp.eq.s32.totalorder %s37, 0
      %p357 = por %p355, %p356
      %s359 = sadd.s32 %s358, 1
      %p362 = scmp.eq.s32.totalorder %s31, 1
      %p363 = scmp.ne.s32.totalorder %s358, %s360
      %p364 = scmp.eq.s32.totalorder %s31, 0
      %p365 = por %p363, %p364
      %p366 = scmp.ne.s32.totalorder %s358, %s360
      %p367 = scmp.eq.s32.totalorder %s36, 1
      %p368 = por %p366, %p367
      %p369 = scmp.ne.s32.totalorder %s360, %s361
      %p370 = scmp.eq.s32.totalorder %s36, 0
      %p371 = por %p369, %p370
      %p372 = scmp.ne.s32.totalorder %s360, %s361
      %p373 = scmp.eq.s32.totalorder %s37, 1
      %p374 = por %p372, %p373
      %p376 = scmp.ne.s32.totalorder %s361, %s375
      %p377 = scmp.eq.s32.totalorder %s37, 0
      %p378 = por %p376, %p377
      %s380 = sadd.s32 %s379, 1
      %p383 = scmp.eq.s32.totalorder %s31, 1
      %p384 = scmp.ne.s32.totalorder %s379, %s381
      %p385 = scmp.eq.s32.totalorder %s31, 0
      %p386 = por %p384, %p385
      %p387 = scmp.ne.s32.totalorder %s379, %s381
      %p388 = scmp.eq.s32.totalorder %s36, 1
      %p389 = por %p387, %p388
      %p390 = scmp.ne.s32.totalorder %s381, %s382
      %p391 = scmp.eq.s32.totalorder %s36, 0
      %p392 = por %p390, %p391
      %p393 = scmp.ne.s32.totalorder %s381, %s382
      %p394 = scmp.eq.s32.totalorder %s37, 1
      %p395 = por %p393, %p394
      %p397 = scmp.ne.s32.totalorder %s382, %s396
      %p398 = scmp.eq.s32.totalorder %s37, 0
      %p399 = por %p397, %p398
      %s401 = sadd.s32 %s400, 1
      %p404 = scmp.eq.s32.totalorder %s31, 1
      %p405 = scmp.ne.s32.totalorder %s400, %s402
      %p406 = scmp.eq.s32.totalorder %s31, 0
      %p407 = por %p405, %p406
      %p408 = scmp.ne.s32.totalorder %s400, %s402
      %p409 = scmp.eq.s32.totalorder %s36, 1
      %p410 = por %p408, %p409
      %p411 = scmp.ne.s32.totalorder %s402, %s403
      %p412 = scmp.eq.s32.totalorder %s36, 0
      %p413 = por %p411, %p412
      %p414 = scmp.ne.s32.totalorder %s402, %s403
      %p415 = scmp.eq.s32.totalorder %s37, 1
      %p416 = por %p414, %p415
      %p418 = scmp.ne.s32.totalorder %s403, %s417
      %p419 = scmp.eq.s32.totalorder %s37, 0
      %p420 = por %p418, %p419
      %s421 = ssub.s32 %s31, %s38
      %p422 = scmp.eq.s32.totalorder %s421, 0
      %s424 = sadd.s32 %s423, 1
      %s425 = scalar_select %p422, %s423, %s424
      %p428 = pneg %p422
      %p429 = scmp.eq.s32.totalorder %s31, 1
      %p430 = por %p428, %p429
      %p431 = scmp.ne.s32.totalorder %s423, %s426
      %p432 = scmp.eq.s32.totalorder %s31, 0
      %p433 = por %p431, %p432
      %p434 = scmp.ne.s32.totalorder %s423, %s426
      %p435 = scmp.eq.s32.totalorder %s36, 1
      %p436 = por %p434, %p435
      %p437 = scmp.ne.s32.totalorder %s426, %s427
      %p438 = scmp.eq.s32.totalorder %s36, 0
      %p439 = por %p437, %p438
      %p440 = scmp.ne.s32.totalorder %s426, %s427
      %p441 = scmp.eq.s32.totalorder %s37, 1
      %p442 = por %p440, %p441
      %p444 = scmp.ne.s32.totalorder %s427, %s443
      %p445 = scmp.eq.s32.totalorder %s37, 0
      %p446 = por %p444, %p445
      %s447 = ssub.s32 %s31, %s38
      %p448 = scmp.eq.s32.totalorder %s447, 0
      %s450 = sadd.s32 %s449, 1
      %s451 = scalar_select %p448, %s449, %s450
      %p454 = pneg %p448
      %p455 = scmp.eq.s32.totalorder %s31, 1
      %p456 = por %p454, %p455
      %p457 = scmp.ne.s32.totalorder %s449, %s452
      %p458 = scmp.eq.s32.totalorder %s31, 0
      %p459 = por %p457, %p458
      %p460 = scmp.ne.s32.totalorder %s449, %s452
      %p461 = scmp.eq.s32.totalorder %s36, 1
      %p462 = por %p460, %p461
      %p463 = scmp.ne.s32.totalorder %s452, %s453
      %p464 = scmp.eq.s32.totalorder %s36, 0
      %p465 = por %p463, %p464
      %p466 = scmp.ne.s32.totalorder %s452, %s453
      %p467 = scmp.eq.s32.totalorder %s37, 1
      %p468 = por %p466, %p467
      %p470 = scmp.ne.s32.totalorder %s453, %s469
      %p471 = scmp.eq.s32.totalorder %s37, 0
      %p472 = por %p470, %p471
      %s473 = ssub.s32 %s31, %s38
      %p474 = scmp.eq.s32.totalorder %s473, 0
      %s476 = sadd.s32 %s475, 1
      %s477 = scalar_select %p474, %s475, %s476
      %p480 = pneg %p474
      %p481 = scmp.eq.s32.totalorder %s31, 1
      %p482 = por %p480, %p481
      %p483 = scmp.ne.s32.totalorder %s475, %s478
      %p484 = scmp.eq.s32.totalorder %s31, 0
      %p485 = por %p483, %p484
      %p486 = scmp.ne.s32.totalorder %s475, %s478
      %p487 = scmp.eq.s32.totalorder %s36, 1
      %p488 = por %p486, %p487
      %p489 = scmp.ne.s32.totalorder %s478, %s479
      %p490 = scmp.eq.s32.totalorder %s36, 0
      %p491 = por %p489, %p490
      %p492 = scmp.ne.s32.totalorder %s478, %s479
      %p493 = scmp.eq.s32.totalorder %s37, 1
      %p494 = por %p492, %p493
      %p496 = scmp.ne.s32.totalorder %s479, %s495
      %p497 = scmp.eq.s32.totalorder %s37, 0
      %p498 = por %p496, %p497
      %s499 = ssub.s32 %s31, %s38
      %p500 = scmp.eq.s32.totalorder %s499, 0
      %s502 = sadd.s32 %s501, 1
      %s503 = scalar_select %p500, %s501, %s502
      %p506 = pneg %p500
      %p507 = scmp.eq.s32.totalorder %s31, 1
      %p508 = por %p506, %p507
      %p509 = scmp.ne.s32.totalorder %s501, %s504
      %p510 = scmp.eq.s32.totalorder %s31, 0
      %p511 = por %p509, %p510
      %p512 = scmp.ne.s32.totalorder %s501, %s504
      %p513 = scmp.eq.s32.totalorder %s36, 1
      %p514 = por %p512, %p513
      %p515 = scmp.ne.s32.totalorder %s504, %s505
      %p516 = scmp.eq.s32.totalorder %s36, 0
      %p517 = por %p515, %p516
      %p518 = scmp.ne.s32.totalorder %s504, %s505
      %p519 = scmp.eq.s32.totalorder %s37, 1
      %p520 = por %p518, %p519
      %p522 = scmp.ne.s32.totalorder %s505, %s521
      %p523 = scmp.eq.s32.totalorder %s37, 0
      %p524 = por %p522, %p523
      %s525 = ssub.s32 %s31, %s38
      %p526 = scmp.eq.s32.totalorder %s525, 0
      %s528 = sadd.s32 %s527, 1
      %s529 = scalar_select %p526, %s527, %s528
      %p532 = pneg %p526
      %p533 = scmp.eq.s32.totalorder %s31, 1
      %p534 = por %p532, %p533
      %p535 = scmp.ne.s32.totalorder %s527, %s530
      %p536 = scmp.eq.s32.totalorder %s31, 0
      %p537 = por %p535, %p536
      %p538 = scmp.ne.s32.totalorder %s527, %s530
      %p539 = scmp.eq.s32.totalorder %s36, 1
      %p540 = por %p538, %p539
      %p541 = scmp.ne.s32.totalorder %s530, %s531
      %p542 = scmp.eq.s32.totalorder %s36, 0
      %p543 = por %p541, %p542
      %p544 = scmp.ne.s32.totalorder %s530, %s531
      %p545 = scmp.eq.s32.totalorder %s37, 1
      %p546 = por %p544, %p545
      %p548 = scmp.ne.s32.totalorder %s531, %s547
      %p549 = scmp.eq.s32.totalorder %s37, 0
      %p550 = por %p548, %p549
      %p551 = scmp.le.s32.totalorder 1, %s31
      %p552 = scmp.lt.s32.totalorder %s31, 3
      %p553 = pnand %p551, %p552
      %p554 = pneg %p553
      // Predicated region
      $region9: #{tpu_custom_call.1} parent=5 // pred_check
        _
      $region10: #{tpu_custom_call.1} parent=5 // pred_check_branch
        %556 = sbr.rel (%p553) target = $region12
      $region11: #{tpu_custom_call.1} parent=5 // pred_region
        %s557 = ssub.s32 %s31, 1
        // Predicated region
        $region13: #{tpu_custom_call.1} parent=11 // pred_check
          %p558 = pneg %p182
        $region14: #{tpu_custom_call.1} parent=11 // pred_check_branch
          %560 = sbr.rel (%p558) target = $region16
        $region15: #{tpu_custom_call.1} parent=11 // pred_region
          _
        $region16: #{tpu_custom_call.1} parent=11 // pred_fallthru
          _
        // Predicated region
        $region17: #{tpu_custom_call.1} parent=11 // pred_check
          %p561 = pneg %p203
        $region18: #{tpu_custom_call.1} parent=11 // pred_check_branch
          %563 = sbr.rel (%p561) target = $region20
        $region19: #{tpu_custom_call.1} parent=11 // pred_region
          _
        $region20: #{tpu_custom_call.1} parent=11 // pred_fallthru
          _
        // Predicated region
        $region21: #{tpu_custom_call.1} parent=11 // pred_check
          %p564 = pneg %p224
        $region22: #{tpu_custom_call.1} parent=11 // pred_check_branch
          %566 = sbr.rel (%p564) target = $region24
        $region23: #{tpu_custom_call.1} parent=11 // pred_region
          _
        $region24: #{tpu_custom_call.1} parent=11 // pred_fallthru
          _
        // Predicated region
        $region25: #{tpu_custom_call.1} parent=11 // pred_check
          %p567 = pneg %p245
        $region26: #{tpu_custom_call.1} parent=11 // pred_check_branch
          %569 = sbr.rel (%p567) target = $region28
        $region27: #{tpu_custom_call.1} parent=11 // pred_region
          _
        $region28: #{tpu_custom_call.1} parent=11 // pred_fallthru
          _
        // Predicated region
        $region29: #{tpu_custom_call.1} parent=11 // pred_check
          %p570 = pneg %p266
        $region30: #{tpu_custom_call.1} parent=11 // pred_check_branch
          %572 = sbr.rel (%p570) target = $region32
        $region31: #{tpu_custom_call.1} parent=11 // pred_region
          _
        $region32: #{tpu_custom_call.1} parent=11 // pred_fallthru
          _
        // Predicated region
        $region33: #{tpu_custom_call.1} parent=11 // pred_check
          %p573 = pneg %p287
        $region34: #{tpu_custom_call.1} parent=11 // pred_check_branch
          %575 = sbr.rel (%p573) target = $region36
        $region35: #{tpu_custom_call.1} parent=11 // pred_region
          _
        $region36: #{tpu_custom_call.1} parent=11 // pred_fallthru
          _
        // Predicated region
        $region37: #{tpu_custom_call.1} parent=11 // pred_check
          %p576 = pneg %p308
        $region38: #{tpu_custom_call.1} parent=11 // pred_check_branch
          %578 = sbr.rel (%p576) target = $region40
        $region39: #{tpu_custom_call.1} parent=11 // pred_region
          _
        $region40: #{tpu_custom_call.1} parent=11 // pred_fallthru
          _
        // Predicated region
        $region41: #{tpu_custom_call.1} parent=11 // pred_check
          %p579 = pneg %p329
        $region42: #{tpu_custom_call.1} parent=11 // pred_check_branch
          %581 = sbr.rel (%p579) target = $region44
        $region43: #{tpu_custom_call.1} parent=11 // pred_region
          _
        $region44: #{tpu_custom_call.1} parent=11 // pred_fallthru
          _
        // Predicated region
        $region45: #{tpu_custom_call.1} parent=11 // pred_check
          %p582 = pneg %p350
        $region46: #{tpu_custom_call.1} parent=11 // pred_check_branch
          %584 = sbr.rel (%p582) target = $region48
        $region47: #{tpu_custom_call.1} parent=11 // pred_region
          _
        $region48: #{tpu_custom_call.1} parent=11 // pred_fallthru
          _
        // Predicated region
        $region49: #{tpu_custom_call.1} parent=11 // pred_check
          %p585 = pneg %p371
        $region50: #{tpu_custom_call.1} parent=11 // pred_check_branch
          %587 = sbr.rel (%p585) target = $region52
        $region51: #{tpu_custom_call.1} parent=11 // pred_region
          _
        $region52: #{tpu_custom_call.1} parent=11 // pred_fallthru
          _
        // Predicated region
        $region53: #{tpu_custom_call.1} parent=11 // pred_check
          %p588 = pneg %p392
        $region54: #{tpu_custom_call.1} parent=11 // pred_check_branch
          %590 = sbr.rel (%p588) target = $region56
        $region55: #{tpu_custom_call.1} parent=11 // pred_region
          _
        $region56: #{tpu_custom_call.1} parent=11 // pred_fallthru
          _
        // Predicated region
        $region57: #{tpu_custom_call.1} parent=11 // pred_check
          %p591 = pneg %p413
        $region58: #{tpu_custom_call.1} parent=11 // pred_check_branch
          %593 = sbr.rel (%p591) target = $region60
        $region59: #{tpu_custom_call.1} parent=11 // pred_region
          _
        $region60: #{tpu_custom_call.1} parent=11 // pred_fallthru
          _
      $region12: #{tpu_custom_call.1} parent=5 // pred_fallthru
        _
      %p594 = scmp.lt.s32.totalorder %s31, 2
      // Predicated region
      $region61: #{tpu_custom_call.1} parent=5 // pred_check
        %p595 = pneg %p594
      $region62: #{tpu_custom_call.1} parent=5 // pred_check_branch
        %597 = sbr.rel (%p595) target = $region64
      $region63: #{tpu_custom_call.1} parent=5 // pred_region
        // Predicated region
        $region65: #{tpu_custom_call.1} parent=63 // pred_check
          %p598 = pneg %p51
        $region66: #{tpu_custom_call.1} parent=63 // pred_check_branch
          %600 = sbr.rel (%p598) target = $region68
        $region67: #{tpu_custom_call.1} parent=63 // pred_region
          %p601 = scmp.lt.s32.totalorder %s31, 1
          %s602 = scalar_select %p601, %s31, 1
          %s603 = smul.addr %s602, 8
          %s604 = scalar_lea.vmem %s0, %s603
        $region68: #{tpu_custom_call.1} parent=63 // pred_fallthru
          _
        // Predicated region
        $region69: #{tpu_custom_call.1} parent=63 // pred_check
          %p605 = pneg %p77
        $region70: #{tpu_custom_call.1} parent=63 // pred_check_branch
          %607 = sbr.rel (%p605) target = $region72
        $region71: #{tpu_custom_call.1} parent=63 // pred_region
          %p608 = scmp.lt.s32.totalorder %s31, 1
          %s609 = scalar_select %p608, %s31, 1
          %s610 = smul.addr %s609, 8
          %s611 = scalar_lea.vmem %s1, %s610
        $region72: #{tpu_custom_call.1} parent=63 // pred_fallthru
          _
        // Predicated region
        $region73: #{tpu_custom_call.1} parent=63 // pred_check
          %p612 = pneg %p103
        $region74: #{tpu_custom_call.1} parent=63 // pred_check_branch
          %614 = sbr.rel (%p612) target = $region76
        $region75: #{tpu_custom_call.1} parent=63 // pred_region
          %p615 = scmp.lt.s32.totalorder %s31, 1
          %s616 = scalar_select %p615, %s31, 1
          %s617 = smul.addr %s616, 8
          %s618 = scalar_lea.vmem %s2, %s617
        $region76: #{tpu_custom_call.1} parent=63 // pred_fallthru
          _
        // Predicated region
        $region77: #{tpu_custom_call.1} parent=63 // pred_check
          %p619 = pneg %p129
        $region78: #{tpu_custom_call.1} parent=63 // pred_check_branch
          %621 = sbr.rel (%p619) target = $region80
        $region79: #{tpu_custom_call.1} parent=63 // pred_region
          %p622 = scmp.lt.s32.totalorder %s31, 1
          %s623 = scalar_select %p622, %s31, 1
          %s624 = smul.addr %s623, 8
          %s625 = scalar_lea.vmem %s3, %s624
        $region80: #{tpu_custom_call.1} parent=63 // pred_fallthru
          _
        // Predicated region
        $region81: #{tpu_custom_call.1} parent=63 // pred_check
          %p626 = pneg %p155
        $region82: #{tpu_custom_call.1} parent=63 // pred_check_branch
          %628 = sbr.rel (%p626) target = $region84
        $region83: #{tpu_custom_call.1} parent=63 // pred_region
          %p629 = scmp.lt.s32.totalorder %s31, 1
          %s630 = scalar_select %p629, %s31, 1
          %s631 = smul.addr %s630, 8
          %s632 = scalar_lea.vmem %s4, %s631
        $region84: #{tpu_custom_call.1} parent=63 // pred_fallthru
          _
      $region64: #{tpu_custom_call.1} parent=5 // pred_fallthru
        _
      %p633 = scmp.le.s32.totalorder 1, %s31
      %p634 = scmp.lt.s32.totalorder %s31, 3
      %p635 = pnand %p633, %p634
      %p636 = pneg %p635
      // Predicated region
      $region85: #{tpu_custom_call.1} parent=5 // pred_check
        _
      $region86: #{tpu_custom_call.1} parent=5 // pred_check_branch
        %638 = sbr.rel (%p635) target = $region88
      $region87: #{tpu_custom_call.1} parent=5 // pred_region
        %s639 = ssub.s32 %s31, 1
        %p640 = scmp.lt.s32.totalorder %s36, 1
        %s641 = scalar_select %p640, %s36, 1
        %s642 = smul.addr %s641, 8
        %s643 = scalar_lea.vmem %s0, %s642
        %p644 = pneg %p57
        %p645 = pneg %p54
        %p646 = scmp.lt.s32.totalorder %s36, 1
        %s647 = scalar_select %p646, %s36, 1
        %s648 = smul.addr %s647, 8
        %s649 = scalar_lea.vmem %s1, %s648
        %p650 = pneg %p83
        %p651 = pneg %p80
        %p652 = scmp.lt.s32.totalorder %s36, 1
        %s653 = scalar_select %p652, %s36, 1
        %s654 = smul.addr %s653, 8
        %s655 = scalar_lea.vmem %s2, %s654
        %p656 = pneg %p109
        %p657 = pneg %p106
        %p658 = scmp.lt.s32.totalorder %s36, 1
        %s659 = scalar_select %p658, %s36, 1
        %s660 = smul.addr %s659, 8
        %s661 = scalar_lea.vmem %s3, %s660
        %p662 = pneg %p135
        %p663 = pneg %p132
        %p664 = scmp.lt.s32.totalorder %s36, 1
        %s665 = scalar_select %p664, %s36, 1
        %s666 = smul.addr %s665, 8
        %s667 = scalar_lea.vmem %s4, %s666
        %p668 = pneg %p161
        %p669 = pneg %p158
        %p670 = pneg %p182
        %p671 = pneg %p179
        %p672 = pneg %p203
        %p673 = pneg %p200
        %p674 = pneg %p224
        %p675 = pneg %p221
        %p676 = pneg %p245
        %p677 = pneg %p242
        %p678 = pneg %p266
        %p679 = pneg %p263
        %p680 = pneg %p287
        %p681 = pneg %p284
        %p682 = pneg %p308
        %p683 = pneg %p305
        %p684 = pneg %p329
        %p685 = pneg %p326
        %p686 = pneg %p350
        %p687 = pneg %p347
        %p688 = pneg %p371
        %p689 = pneg %p368
        %p690 = pneg %p392
        %p691 = pneg %p389
        %p692 = pneg %p413
        %p693 = pneg %p410
        %p694 = pneg %p439
        %p695 = pneg %p436
        %p696 = scmp.lt.s32.totalorder %s36, 1
        %s697 = scalar_select %p696, %s36, 1
        %s698 = smul.addr %s697, 8
        %s699 = scalar_lea.vmem %s17, %s698
        %p700 = pneg %p465
        %p701 = pneg %p462
        %p702 = scmp.lt.s32.totalorder %s36, 1
        %s703 = scalar_select %p702, %s36, 1
        %s704 = smul.addr %s703, 8
        %s705 = scalar_lea.vmem %s18, %s704
        %p706 = pneg %p491
        %p707 = pneg %p488
        %p708 = scmp.lt.s32.totalorder %s36, 1
        %s709 = scalar_select %p708, %s36, 1
        %s710 = smul.addr %s709, 8
        %s711 = scalar_lea.vmem %s19, %s710
        %p712 = pneg %p517
        %p713 = pneg %p514
        %p714 = scmp.lt.s32.totalorder %s36, 1
        %s715 = scalar_select %p714, %s36, 1
        %s716 = smul.addr %s715, 8
        %s717 = scalar_lea.vmem %s20, %s716
        %p718 = pneg %p543
        %p719 = pneg %p540
        %s720 = sand.u32 %s530, 1
        %s721 = scalar_lea.sflag [#allocation3], %s720
        %s722 = sand.u32 %s530, 1
        %s723 = smul.addr %s722, 8
        %s724 = scalar_lea.vmem [#allocation2], %s723
        %p725 = scmp.lt.s32.totalorder %s36, 1
        %s726 = scalar_select %p725, %s36, 1
        %s727 = smul.addr %s726, 8
        %s728 = scalar_lea.vmem %s0, %s727
        %p729 = scmp.lt.s32.totalorder %s36, 1
        %s730 = scalar_select %p729, %s36, 1
        %s731 = smul.addr %s730, 8
        %s732 = scalar_lea.vmem %s1, %s731
        %p733 = scmp.lt.s32.totalorder %s36, 1
        %s734 = scalar_select %p733, %s36, 1
        %s735 = smul.addr %s734, 8
        %s736 = scalar_lea.vmem %s2, %s735
        %p737 = scmp.lt.s32.totalorder %s36, 1
        %s738 = scalar_select %p737, %s36, 1
        %s739 = smul.addr %s738, 8
        %s740 = scalar_lea.vmem %s3, %s739
        %p741 = scmp.lt.s32.totalorder %s36, 1
        %s742 = scalar_select %p741, %s36, 1
        %s743 = smul.addr %s742, 8
        %s744 = scalar_lea.vmem %s4, %s743
        %p745 = scmp.lt.s32.totalorder %s36, 1
        %s746 = scalar_select %p745, %s36, 1
        %s747 = smul.addr %s746, 8
        %s748 = scalar_lea.vmem %s17, %s747
        %p749 = scmp.lt.s32.totalorder %s36, 1
        %s750 = scalar_select %p749, %s36, 1
        %s751 = smul.addr %s750, 8
        %s752 = scalar_lea.vmem %s18, %s751
        %p753 = scmp.lt.s32.totalorder %s36, 1
        %s754 = scalar_select %p753, %s36, 1
        %s755 = smul.addr %s754, 8
        %s756 = scalar_lea.vmem %s19, %s755
        %p757 = scmp.lt.s32.totalorder %s36, 1
        %s758 = scalar_select %p757, %s36, 1
        %s759 = smul.addr %s758, 8
        %s760 = scalar_lea.vmem %s20, %s759
        %v767 = vld [vmem:[%s728] sm:$0xff]
        %v768 = vpack.c.bf16 %v767, %v767
        %v769 = vld [vmem:[%s732] sm:$0xff]
        %v770 = vpack.c.bf16 %v769, %v769
        %v771 = vld [vmem:[%s736] sm:$0xff]
        %v772 = vpack.c.bf16 %v771, %v771
        %v773 = vld [vmem:[%s740] sm:$0xff]
        %v774 = vpack.c.bf16 %v773, %v773
        %v775 = vld [vmem:[%s744] sm:$0xff]
        %v776 = vpack.c.bf16 %v775, %v775
        %v778 = vrot.slane %v776, 4
        %779 = vrot.lane.b32.xlu0 %v778, 112
        %v780 = vpop.permute.xlu0 %779
        %vm781 = vcmask 1043456
        %v784 = vsel %vm781, %v776, %v780
        %v785 = vld [vmem:[%s10] sm:$0x1]
        %v786 = vld [vmem:[%s16] sm:$0x1]
        %v787 = vld [vmem:[%s5] sm:$0xf]
        %v789 = vlaneseq
        %v790 = vshrl.u32 %v789, 7
        %v791 = vsub.s32 0, %v790
        %v792 = vrot.slane %v785, %v791
        %vm794 = vcmask 64512
        %v796 = vsel %vm794, %v768, 0
        %v799 = vsel %vm781, %v787, 0
        %801 = vmatprep.subr.bf16.mxu0 0
        %802 = vmatpush1.bf16.msra.mxu0 %v799
        %803 = vmatprep.subr.bf16.mxu0 0
        %804 = vmatpush1.bf16.msra.mxu0 0
        %805 = vmatprep.subr.bf16.mxu0 0
        %806 = vmatpush1.bf16.msra.mxu0 0
        %807 = vmatprep.subr.bf16.mxu0 0
        %808 = vmatpush1.bf16.msra.mxu0 0
        %809 = vmatprep.subr.bf16.mxu0 0
        %810 = vmatpush1.bf16.msra.mxu0 0
        %811 = vmatprep.subr.bf16.mxu0 0
        %812 = vmatpush1.bf16.msra.mxu0 0
        %813 = vmatprep.subr.bf16.mxu0 0
        %814 = vmatpush1.bf16.msra.mxu0 0
        %815 = vmatprep.subr.bf16.mxu0 0
        %816 = vmatpush1.bf16.msra.mxu0 0
        %817 = vmatprep.subr.bf16.mxu0 0
        %818 = vmatpush1.bf16.msra.mxu0 0
        %819 = vmatprep.subr.bf16.mxu0 0
        %820 = vmatpush1.bf16.msra.mxu0 0
        %821 = vmatprep.subr.bf16.mxu0 0
        %822 = vmatpush1.bf16.msra.mxu0 0
        %823 = vmatprep.subr.bf16.mxu0 0
        %824 = vmatpush1.bf16.msra.mxu0 0
        %825 = vmatprep.subr.bf16.mxu0 0
        %826 = vmatpush1.bf16.msra.mxu0 0
        %827 = vmatprep.subr.bf16.mxu0 0
        %828 = vmatpush1.bf16.msra.mxu0 0
        %829 = vmatprep.subr.bf16.mxu0 0
        %830 = vmatpush1.bf16.msra.mxu0 0
        %831 = vmatprep.subr.bf16.mxu0 0
        %832 = vmatpush1.bf16.msra.mxu0 0
        %833 = vmatprep.mubr.bf16.mxu0 0
        %834 = vmatmul.mubr.bf16.gmra.mrb[0].mxu0 %v796
        %v835 = vpop.f32.mrb[0].mxu0
        %v836 = vadd.f32 %v792, %v835
        %v837 = vpop.f32.mrb[0].mxu0
        %v838 = vpop.f32.mrb[0].mxu0
        %v839 = vpop.f32.mrb[0].mxu0
        %840 = vdwg.mxu0
        %v841 = vld [vmem:[%s6] sm:$0xf]
        %v843 = vsel %vm794, %v770, 0
        %v846 = vsel %vm781, %v841, 0
        %848 = vmatprep.subr.bf16.mxu0 0
        %849 = vmatpush1.bf16.msra.mxu0 %v846
        %850 = vmatprep.subr.bf16.mxu0 0
        %851 = vmatpush1.bf16.msra.mxu0 0
        %852 = vmatprep.subr.bf16.mxu0 0
        %853 = vmatpush1.bf16.msra.mxu0 0
        %854 = vmatprep.subr.bf16.mxu0 0
        %855 = vmatpush1.bf16.msra.mxu0 0
        %856 = vmatprep.subr.bf16.mxu0 0
        %857 = vmatpush1.bf16.msra.mxu0 0
        %858 = vmatprep.subr.bf16.mxu0 0
        %859 = vmatpush1.bf16.msra.mxu0 0
        %860 = vmatprep.subr.bf16.mxu0 0
        %861 = vmatpush1.bf16.msra.mxu0 0
        %862 = vmatprep.subr.bf16.mxu0 0
        %863 = vmatpush1.bf16.msra.mxu0 0
        %864 = vmatprep.subr.bf16.mxu0 0
        %865 = vmatpush1.bf16.msra.mxu0 0
        %866 = vmatprep.subr.bf16.mxu0 0
        %867 = vmatpush1.bf16.msra.mxu0 0
        %868 = vmatprep.subr.bf16.mxu0 0
        %869 = vmatpush1.bf16.msra.mxu0 0
        %870 = vmatprep.subr.bf16.mxu0 0
        %871 = vmatpush1.bf16.msra.mxu0 0
        %872 = vmatprep.subr.bf16.mxu0 0
        %873 = vmatpush1.bf16.msra.mxu0 0
        %874 = vmatprep.subr.bf16.mxu0 0
        %875 = vmatpush1.bf16.msra.mxu0 0
        %876 = vmatprep.subr.bf16.mxu0 0
        %877 = vmatpush1.bf16.msra.mxu0 0
        %878 = vmatprep.subr.bf16.mxu0 0
        %879 = vmatpush1.bf16.msra.mxu0 0
        %880 = vmatprep.mubr.bf16.mxu0 0
        %881 = vmatmul.mubr.bf16.gmra.mrb[0].mxu0 %v843
        %v882 = vpop.f32.mrb[0].mxu0
        %v883 = vadd.f32 0.0, %v882
        %v884 = vpop.f32.mrb[0].mxu0
        %v885 = vpop.f32.mrb[0].mxu0
        %v886 = vpop.f32.mrb[0].mxu0
        %887 = vdwg.mxu0
        %v888 = vld [vmem:[%s7] sm:$0xf]
        %v890 = vsel %vm794, %v772, 0
        %v893 = vsel %vm781, %v888, 0
        %895 = vmatprep.subr.bf16.mxu0 0
        %896 = vmatpush1.bf16.msra.mxu0 %v893
        %897 = vmatprep.subr.bf16.mxu0 0
        %898 = vmatpush1.bf16.msra.mxu0 0
        %899 = vmatprep.subr.bf16.mxu0 0
        %900 = vmatpush1.bf16.msra.mxu0 0
        %901 = vmatprep.subr.bf16.mxu0 0
        %902 = vmatpush1.bf16.msra.mxu0 0
        %903 = vmatprep.subr.bf16.mxu0 0
        %904 = vmatpush1.bf16.msra.mxu0 0
        %905 = vmatprep.subr.bf16.mxu0 0
        %906 = vmatpush1.bf16.msra.mxu0 0
        %907 = vmatprep.subr.bf16.mxu0 0
        %908 = vmatpush1.bf16.msra.mxu0 0
        %909 = vmatprep.subr.bf16.mxu0 0
        %910 = vmatpush1.bf16.msra.mxu0 0
        %911 = vmatprep.subr.bf16.mxu0 0
        %912 = vmatpush1.bf16.msra.mxu0 0
        %913 = vmatprep.subr.bf16.mxu0 0
        %914 = vmatpush1.bf16.msra.mxu0 0
        %915 = vmatprep.subr.bf16.mxu0 0
        %916 = vmatpush1.bf16.msra.mxu0 0
        %917 = vmatprep.subr.bf16.mxu0 0
        %918 = vmatpush1.bf16.msra.mxu0 0
        %919 = vmatprep.subr.bf16.mxu0 0
        %920 = vmatpush1.bf16.msra.mxu0 0
        %921 = vmatprep.subr.bf16.mxu0 0
        %922 = vmatpush1.bf16.msra.mxu0 0
        %923 = vmatprep.subr.bf16.mxu0 0
        %924 = vmatpush1.bf16.msra.mxu0 0
        %925 = vmatprep.subr.bf16.mxu0 0
        %926 = vmatpush1.bf16.msra.mxu0 0
        %927 = vmatprep.mubr.bf16.mxu0 0
        %928 = vmatmul.mubr.bf16.gmra.mrb[0].mxu0 %v890
        %v929 = vpop.f32.mrb[0].mxu0
        %v930 = vadd.f32 0.0, %v929
        %v931 = vpop.f32.mrb[0].mxu0
        %v932 = vpop.f32.mrb[0].mxu0
        %v933 = vpop.f32.mrb[0].mxu0
        %934 = vdwg.mxu0
        %v935 = vld [vmem:[%s8] sm:$0xf]
        %v937 = vsel %vm794, %v774, 0
        %v940 = vsel %vm781, %v935, 0
        %942 = vmatprep.subr.bf16.mxu0 0
        %943 = vmatpush1.bf16.msra.mxu0 %v940
        %944 = vmatprep.subr.bf16.mxu0 0
        %945 = vmatpush1.bf16.msra.mxu0 0
        %946 = vmatprep.subr.bf16.mxu0 0
        %947 = vmatpush1.bf16.msra.mxu0 0
        %948 = vmatprep.subr.bf16.mxu0 0
        %949 = vmatpush1.bf16.msra.mxu0 0
        %950 = vmatprep.subr.bf16.mxu0 0
        %951 = vmatpush1.bf16.msra.mxu0 0
        %952 = vmatprep.subr.bf16.mxu0 0
        %953 = vmatpush1.bf16.msra.mxu0 0
        %954 = vmatprep.subr.bf16.mxu0 0
        %955 = vmatpush1.bf16.msra.mxu0 0
        %956 = vmatprep.subr.bf16.mxu0 0
        %957 = vmatpush1.bf16.msra.mxu0 0
        %958 = vmatprep.subr.bf16.mxu0 0
        %959 = vmatpush1.bf16.msra.mxu0 0
        %960 = vmatprep.subr.bf16.mxu0 0
        %961 = vmatpush1.bf16.msra.mxu0 0
        %962 = vmatprep.subr.bf16.mxu0 0
        %963 = vmatpush1.bf16.msra.mxu0 0
        %964 = vmatprep.subr.bf16.mxu0 0
        %965 = vmatpush1.bf16.msra.mxu0 0
        %966 = vmatprep.subr.bf16.mxu0 0
        %967 = vmatpush1.bf16.msra.mxu0 0
        %968 = vmatprep.subr.bf16.mxu0 0
        %969 = vmatpush1.bf16.msra.mxu0 0
        %970 = vmatprep.subr.bf16.mxu0 0
        %971 = vmatpush1.bf16.msra.mxu0 0
        %972 = vmatprep.subr.bf16.mxu0 0
        %973 = vmatpush1.bf16.msra.mxu0 0
        %974 = vmatprep.mubr.bf16.mxu0 0
        %975 = vmatmul.mubr.bf16.gmra.mrb[0].mxu0 %v937
        %v976 = vpop.f32.mrb[0].mxu0
        %v977 = vadd.f32 0.0, %v976
        %v978 = vpop.f32.mrb[0].mxu0
        %v979 = vpop.f32.mrb[0].mxu0
        %v980 = vpop.f32.mrb[0].mxu0
        %981 = vdwg.mxu0
        %v982 = vld [vmem:[%s9] sm:$0xf]
        %v983 = vld [vmem:[%s9 + $0x4] sm:$0xf]
        %v986 = vunpack.c.l.b16 %v982
        %v987 = vunpack.c.l.b16 %v983
        %v988 = vpack.c.b16 %v987, %v986
        %vm990 = vcmask 130048
        %v991 = vsel %vm990, %v784, 0
        %993 = vmatprep.subr.bf16.mxu0 0
        %994 = vmatpush1.bf16.msra.mxu0 %v988
        %995 = vmatprep.subr.bf16.mxu0 0
        %996 = vmatpush1.bf16.msra.mxu0 0
        %997 = vmatprep.subr.bf16.mxu0 0
        %998 = vmatpush1.bf16.msra.mxu0 0
        %999 = vmatprep.subr.bf16.mxu0 0
        %1000 = vmatpush1.bf16.msra.mxu0 0
        %1001 = vmatprep.subr.bf16.mxu0 0
        %1002 = vmatpush1.bf16.msra.mxu0 0
        %1003 = vmatprep.subr.bf16.mxu0 0
        %1004 = vmatpush1.bf16.msra.mxu0 0
        %1005 = vmatprep.subr.bf16.mxu0 0
        %1006 = vmatpush1.bf16.msra.mxu0 0
        %1007 = vmatprep.subr.bf16.mxu0 0
        %1008 = vmatpush1.bf16.msra.mxu0 0
        %1009 = vmatprep.subr.bf16.mxu0 0
        %1010 = vmatpush1.bf16.msra.mxu0 0
        %1011 = vmatprep.subr.bf16.mxu0 0
        %1012 = vmatpush1.bf16.msra.mxu0 0
        %1013 = vmatprep.subr.bf16.mxu0 0
        %1014 = vmatpush1.bf16.msra.mxu0 0
        %1015 = vmatprep.subr.bf16.mxu0 0
        %1016 = vmatpush1.bf16.msra.mxu0 0
        %1017 = vmatprep.subr.bf16.mxu0 0
        %1018 = vmatpush1.bf16.msra.mxu0 0
        %1019 = vmatprep.subr.bf16.mxu0 0
        %1020 = vmatpush1.bf16.msra.mxu0 0
        %1021 = vmatprep.subr.bf16.mxu0 0
        %1022 = vmatpush1.bf16.msra.mxu0 0
        %1023 = vmatprep.subr.bf16.mxu0 0
        %1024 = vmatpush1.bf16.msra.mxu0 0
        %1025 = vmatprep.mubr.bf16.mxu0 0
        %1026 = vmatmul.mubr.bf16.gmra.mrb[0].mxu0 %v991
        %v1027 = vpop.f32.mrb[0].mxu0
        %v1028 = vadd.f32 0.0, %v1027
        %v1029 = vpop.f32.mrb[0].mxu0
        %v1030 = vpop.f32.mrb[0].mxu0
        %v1031 = vadd.f32 0.0, %v1030
        %v1032 = vpop.f32.mrb[0].mxu0
        %1033 = vdwg.mxu0
        %v1034 = vpack.c.bf16 %v836, %v836
        %v1035 = vpack.c.bf16 %v883, %v883
        %v1036 = vpack.c.bf16 %v930, %v930
        %v1037 = vpack.c.bf16 %v977, %v977
        %v1038 = vpack.c.bf16 %v1031, %v1028
        %v1039 = vadd.bf16 %v1034, %v1035
        %v1040 = vmul.bf16 %v1039, 1052065461
        %v1041 = vsub.bf16 %v1034, %v1035
        %v1042 = vmul.bf16 %v1041, 1052065461
        %v1043 = vadd.bf16 %v1036, %v1037
        %v1044 = vmul.bf16 %v1043, 1052065461
        %v1045 = vsub.bf16 %v1036, %v1037
        %v1046 = vmul.bf16 %v1045, 1052065461
        %v1047 = vadd.bf16 %v1040, %v1044
        %v1048 = vsub.bf16 %v1040, %v1044
        %v1049 = vadd.bf16 %v1042, %v1046
        %v1050 = vsub.bf16 %v1042, %v1046
        %v1052 = vrot.slane %v1038, 4
        %1053 = vrot.lane.b32.xlu0 %v1052, 112
        %v1054 = vpop.permute.xlu0 %1053
        %v1056 = vadd.bf16 %v1038, %v1054
        %v1057 = vmul.bf16 %v1056, 1056980736
        %v1058 = vsub.bf16 %v1038, %v1054
        %v1059 = vmul.bf16 %v1058, 1056980736
        %v1060 = vadd.bf16 %v1047, %v1057
        %v1061 = vmul.bf16 %v1060, %v1060
        %v1062 = vmul.bf16 %v1060, %v1061
        %v1063 = vmul.bf16 %v1062, 1027030327
        %v1064 = vadd.bf16 %v1060, %v1063
        %v1065 = vmul.bf16 %v1064, 1061961548
        %v1066 = vtanh.bf16.pop %v1065
        %v1067 = vadd.bf16 %v1066, 1065369472
        %v1068 = vmul.bf16 %v1067, 1056980736
        %v1069 = vmul.bf16 %v1060, %v1068
        %v1071 = vrot.slane %v1059, 4
        %v1073 = vadd.bf16 %v1048, %v1071
        %v1074 = vmul.bf16 %v1073, %v1073
        %v1075 = vmul.bf16 %v1073, %v1074
        %v1076 = vmul.bf16 %v1075, 1027030327
        %v1077 = vadd.bf16 %v1073, %v1076
        %v1078 = vmul.bf16 %v1077, 1061961548
        %v1079 = vtanh.bf16.pop %v1078
        %v1080 = vadd.bf16 %v1079, 1065369472
        %v1081 = vmul.bf16 %v1080, 1056980736
        %v1082 = vmul.bf16 %v1073, %v1081
        %v1083 = vsub.bf16 %v1047, %v1057
        %v1084 = vmul.bf16 %v1083, %v1083
        %v1085 = vmul.bf16 %v1083, %v1084
        %v1086 = vmul.bf16 %v1085, 1027030327
        %v1087 = vadd.bf16 %v1083, %v1086
        %v1088 = vmul.bf16 %v1087, 1061961548
        %v1089 = vtanh.bf16.pop %v1088
        %v1090 = vadd.bf16 %v1089, 1065369472
        %v1091 = vmul.bf16 %v1090, 1056980736
        %v1092 = vmul.bf16 %v1083, %v1091
        %v1093 = vsub.bf16 %v1048, %v1071
        %v1094 = vmul.bf16 %v1093, %v1093
        %v1095 = vmul.bf16 %v1093, %v1094
        %v1096 = vmul.bf16 %v1095, 1027030327
        %v1097 = vadd.bf16 %v1093, %v1096
        %v1098 = vmul.bf16 %v1097, 1061961548
        %v1099 = vtanh.bf16.pop %v1098
        %v1100 = vadd.bf16 %v1099, 1065369472
        %v1101 = vmul.bf16 %v1100, 1056980736
        %v1102 = vmul.bf16 %v1093, %v1101
        %v1103 = vadd.bf16 %v1049, %v1059
        %v1104 = vmul.bf16 %v1103, %v1103
        %v1105 = vmul.bf16 %v1103, %v1104
        %v1106 = vmul.bf16 %v1105, 1027030327
        %v1107 = vadd.bf16 %v1103, %v1106
        %v1108 = vmul.bf16 %v1107, 1061961548
        %v1109 = vtanh.bf16.pop %v1108
        %v1110 = vadd.bf16 %v1109, 1065369472
        %v1111 = vmul.bf16 %v1110, 1056980736
        %v1112 = vmul.bf16 %v1103, %v1111
        %v1114 = vrot.slane %v1057, 4
        %v1116 = vadd.bf16 %v1050, %v1114
        %v1117 = vmul.bf16 %v1116, %v1116
        %v1118 = vmul.bf16 %v1116, %v1117
        %v1119 = vmul.bf16 %v1118, 1027030327
        %v1120 = vadd.bf16 %v1116, %v1119
        %v1121 = vmul.bf16 %v1120, 1061961548
        %v1122 = vtanh.bf16.pop %v1121
        %v1123 = vadd.bf16 %v1122, 1065369472
        %v1124 = vmul.bf16 %v1123, 1056980736
        %v1125 = vmul.bf16 %v1116, %v1124
        %v1126 = vsub.bf16 %v1049, %v1059
        %v1127 = vmul.bf16 %v1126, %v1126
        %v1128 = vmul.bf16 %v1126, %v1127
        %v1129 = vmul.bf16 %v1128, 1027030327
        %v1130 = vadd.bf16 %v1126, %v1129
        %v1131 = vmul.bf16 %v1130, 1061961548
        %v1132 = vtanh.bf16.pop %v1131
        %v1133 = vadd.bf16 %v1132, 1065369472
        %v1134 = vmul.bf16 %v1133, 1056980736
        %v1135 = vmul.bf16 %v1126, %v1134
        %v1136 = vsub.bf16 %v1050, %v1114
        %v1137 = vmul.bf16 %v1136, %v1136
        %v1138 = vmul.bf16 %v1136, %v1137
        %v1139 = vmul.bf16 %v1138, 1027030327
        %v1140 = vadd.bf16 %v1136, %v1139
        %v1141 = vmul.bf16 %v1140, 1061961548
        %v1142 = vtanh.bf16.pop %v1141
        %v1143 = vadd.bf16 %v1142, 1065369472
        %v1144 = vmul.bf16 %v1143, 1056980736
        %v1145 = vmul.bf16 %v1136, %v1144
        %v1146 = vadd.bf16 %v1069, %v1092
        %v1147 = vsub.bf16 %v1069, %v1092
        %v1148 = vadd.bf16 %v1082, %v1102
        %v1149 = vsub.bf16 %v1082, %v1102
        %v1150 = vadd.bf16 %v1112, %v1135
        %v1151 = vsub.bf16 %v1112, %v1135
        %v1152 = vadd.bf16 %v1125, %v1145
        %v1153 = vsub.bf16 %v1125, %v1145
        %v1154 = vadd.bf16 %v1146, %v1148
        %v1155 = vmul.bf16 %v1154, 1052065461
        %v1156 = vsub.bf16 %v1146, %v1148
        %v1157 = vmul.bf16 %v1156, 1052065461
        %v1158 = vadd.bf16 %v1150, %v1152
        %v1159 = vmul.bf16 %v1158, 1052065461
        %v1160 = vsub.bf16 %v1150, %v1152
        %v1161 = vmul.bf16 %v1160, 1052065461
        %v1162 = vadd.bf16 %v1155, %v1159
        %v1163 = vsub.bf16 %v1155, %v1159
        %v1164 = vadd.bf16 %v1157, %v1161
        %v1165 = vsub.bf16 %v1157, %v1161
        %v1166 = vadd.bf16 %v1147, %v1151
        %v1167 = vmul.bf16 %v1166, 1056980736
        %v1168 = vadd.bf16 %v1149, %v1153
        %v1169 = vmul.bf16 %v1168, 1056980736
        %v1170 = vsub.bf16 %v1153, %v1149
        %v1171 = vmul.bf16 %v1170, 1056980736
        %v1172 = vsub.bf16 %v1147, %v1151
        %v1173 = vmul.bf16 %v1172, 1056980736
        %v1174 = vld [vmem:[%s11] sm:$0xf]
        %v1175 = vld [vmem:[%s11 + $0x4] sm:$0xf]
        %v1177 = vlaneseq
        %v1178 = vshrl.u32 %v1177, 7
        %v1179 = vsub.s32 0, %v1178
        %v1180 = vrot.slane %v786, %v1179
        %v1184 = vunpack.c.l.b16 %v1174
        %v1185 = vunpack.c.l.b16 %v1175
        %v1186 = vpack.c.b16 %v1185, %v1184
        %v1189 = vsel %vm990, %v1162, 0
        %1191 = vmatprep.subr.bf16.mxu0 0
        %1192 = vmatpush1.bf16.msra.mxu0 %v1186
        %1193 = vmatprep.subr.bf16.mxu0 0
        %1194 = vmatpush1.bf16.msra.mxu0 0
        %1195 = vmatprep.subr.bf16.mxu0 0
        %1196 = vmatpush1.bf16.msra.mxu0 0
        %1197 = vmatprep.subr.bf16.mxu0 0
        %1198 = vmatpush1.bf16.msra.mxu0 0
        %1199 = vmatprep.subr.bf16.mxu0 0
        %1200 = vmatpush1.bf16.msra.mxu0 0
        %1201 = vmatprep.subr.bf16.mxu0 0
        %1202 = vmatpush1.bf16.msra.mxu0 0
        %1203 = vmatprep.subr.bf16.mxu0 0
        %1204 = vmatpush1.bf16.msra.mxu0 0
        %1205 = vmatprep.subr.bf16.mxu0 0
        %1206 = vmatpush1.bf16.msra.mxu0 0
        %1207 = vmatprep.subr.bf16.mxu0 0
        %1208 = vmatpush1.bf16.msra.mxu0 0
        %1209 = vmatprep.subr.bf16.mxu0 0
        %1210 = vmatpush1.bf16.msra.mxu0 0
        %1211 = vmatprep.subr.bf16.mxu0 0
        %1212 = vmatpush1.bf16.msra.mxu0 0
        %1213 = vmatprep.subr.bf16.mxu0 0
        %1214 = vmatpush1.bf16.msra.mxu0 0
        %1215 = vmatprep.subr.bf16.mxu0 0
        %1216 = vmatpush1.bf16.msra.mxu0 0
        %1217 = vmatprep.subr.bf16.mxu0 0
        %1218 = vmatpush1.bf16.msra.mxu0 0
        %1219 = vmatprep.subr.bf16.mxu0 0
        %1220 = vmatpush1.bf16.msra.mxu0 0
        %1221 = vmatprep.subr.bf16.mxu0 0
        %1222 = vmatpush1.bf16.msra.mxu0 0
        %1223 = vmatprep.mubr.bf16.mxu0 0
        %1224 = vmatmul.mubr.bf16.gmra.mrb[0].mxu0 %v1189
        %v1225 = vpop.f32.mrb[0].mxu0
        %v1226 = vadd.f32 %v1180, %v1225
        %v1227 = vpop.f32.mrb[0].mxu0
        %v1228 = vpop.f32.mrb[0].mxu0
        %v1229 = vpop.f32.mrb[0].mxu0
        %1230 = vdwg.mxu0
        %v1231 = vld [vmem:[%s12] sm:$0xf]
        %v1232 = vld [vmem:[%s12 + $0x4] sm:$0xf]
        %v1235 = vunpack.c.l.b16 %v1231
        %v1236 = vunpack.c.l.b16 %v1232
        %v1237 = vpack.c.b16 %v1236, %v1235
        %v1240 = vsel %vm990, %v1163, 0
        %1242 = vmatprep.subr.bf16.mxu0 0
        %1243 = vmatpush1.bf16.msra.mxu0 %v1237
        %1244 = vmatprep.subr.bf16.mxu0 0
        %1245 = vmatpush1.bf16.msra.mxu0 0
        %1246 = vmatprep.subr.bf16.mxu0 0
        %1247 = vmatpush1.bf16.msra.mxu0 0
        %1248 = vmatprep.subr.bf16.mxu0 0
        %1249 = vmatpush1.bf16.msra.mxu0 0
        %1250 = vmatprep.subr.bf16.mxu0 0
        %1251 = vmatpush1.bf16.msra.mxu0 0
        %1252 = vmatprep.subr.bf16.mxu0 0
        %1253 = vmatpush1.bf16.msra.mxu0 0
        %1254 = vmatprep.subr.bf16.mxu0 0
        %1255 = vmatpush1.bf16.msra.mxu0 0
        %1256 = vmatprep.subr.bf16.mxu0 0
        %1257 = vmatpush1.bf16.msra.mxu0 0
        %1258 = vmatprep.subr.bf16.mxu0 0
        %1259 = vmatpush1.bf16.msra.mxu0 0
        %1260 = vmatprep.subr.bf16.mxu0 0
        %1261 = vmatpush1.bf16.msra.mxu0 0
        %1262 = vmatprep.subr.bf16.mxu0 0
        %1263 = vmatpush1.bf16.msra.mxu0 0
        %1264 = vmatprep.subr.bf16.mxu0 0
        %1265 = vmatpush1.bf16.msra.mxu0 0
        %1266 = vmatprep.subr.bf16.mxu0 0
        %1267 = vmatpush1.bf16.msra.mxu0 0
        %1268 = vmatprep.subr.bf16.mxu0 0
        %1269 = vmatpush1.bf16.msra.mxu0 0
        %1270 = vmatprep.subr.bf16.mxu0 0
        %1271 = vmatpush1.bf16.msra.mxu0 0
        %1272 = vmatprep.subr.bf16.mxu0 0
        %1273 = vmatpush1.bf16.msra.mxu0 0
        %1274 = vmatprep.mubr.bf16.mxu0 0
        %1275 = vmatmul.mubr.bf16.gmra.mrb[0].mxu0 %v1240
        %v1276 = vpop.f32.mrb[0].mxu0
        %v1277 = vadd.f32 0.0, %v1276
        %v1278 = vpop.f32.mrb[0].mxu0
        %v1279 = vpop.f32.mrb[0].mxu0
        %v1280 = vpop.f32.mrb[0].mxu0
        %1281 = vdwg.mxu0
        %v1282 = vld [vmem:[%s13] sm:$0xf]
        %v1283 = vld [vmem:[%s13 + $0x4] sm:$0xf]
        %v1286 = vunpack.c.l.b16 %v1282
        %v1287 = vunpack.c.l.b16 %v1283
        %v1288 = vpack.c.b16 %v1287, %v1286
        %v1291 = vsel %vm990, %v1164, 0
        %1293 = vmatprep.subr.bf16.mxu0 0
        %1294 = vmatpush1.bf16.msra.mxu0 %v1288
        %1295 = vmatprep.subr.bf16.mxu0 0
        %1296 = vmatpush1.bf16.msra.mxu0 0
        %1297 = vmatprep.subr.bf16.mxu0 0
        %1298 = vmatpush1.bf16.msra.mxu0 0
        %1299 = vmatprep.subr.bf16.mxu0 0
        %1300 = vmatpush1.bf16.msra.mxu0 0
        %1301 = vmatprep.subr.bf16.mxu0 0
        %1302 = vmatpush1.bf16.msra.mxu0 0
        %1303 = vmatprep.subr.bf16.mxu0 0
        %1304 = vmatpush1.bf16.msra.mxu0 0
        %1305 = vmatprep.subr.bf16.mxu0 0
        %1306 = vmatpush1.bf16.msra.mxu0 0
        %1307 = vmatprep.subr.bf16.mxu0 0
        %1308 = vmatpush1.bf16.msra.mxu0 0
        %1309 = vmatprep.subr.bf16.mxu0 0
        %1310 = vmatpush1.bf16.msra.mxu0 0
        %1311 = vmatprep.subr.bf16.mxu0 0
        %1312 = vmatpush1.bf16.msra.mxu0 0
        %1313 = vmatprep.subr.bf16.mxu0 0
        %1314 = vmatpush1.bf16.msra.mxu0 0
        %1315 = vmatprep.subr.bf16.mxu0 0
        %1316 = vmatpush1.bf16.msra.mxu0 0
        %1317 = vmatprep.subr.bf16.mxu0 0
        %1318 = vmatpush1.bf16.msra.mxu0 0
        %1319 = vmatprep.subr.bf16.mxu0 0
        %1320 = vmatpush1.bf16.msra.mxu0 0
        %1321 = vmatprep.subr.bf16.mxu0 0
        %1322 = vmatpush1.bf16.msra.mxu0 0
        %1323 = vmatprep.subr.bf16.mxu0 0
        %1324 = vmatpush1.bf16.msra.mxu0 0
        %1325 = vmatprep.mubr.bf16.mxu0 0
        %1326 = vmatmul.mubr.bf16.gmra.mrb[0].mxu0 %v1291
        %v1327 = vpop.f32.mrb[0].mxu0
        %v1328 = vadd.f32 0.0, %v1327
        %v1329 = vpop.f32.mrb[0].mxu0
        %v1330 = vpop.f32.mrb[0].mxu0
        %v1331 = vpop.f32.mrb[0].mxu0
        %1332 = vdwg.mxu0
        %v1333 = vld [vmem:[%s14] sm:$0xf]
        %v1334 = vld [vmem:[%s14 + $0x4] sm:$0xf]
        %v1337 = vunpack.c.l.b16 %v1333
        %v1338 = vunpack.c.l.b16 %v1334
        %v1339 = vpack.c.b16 %v1338, %v1337
        %v1342 = vsel %vm990, %v1165, 0
        %1344 = vmatprep.subr.bf16.mxu0 0
        %1345 = vmatpush1.bf16.msra.mxu0 %v1339
        %1346 = vmatprep.subr.bf16.mxu0 0
        %1347 = vmatpush1.bf16.msra.mxu0 0
        %1348 = vmatprep.subr.bf16.mxu0 0
        %1349 = vmatpush1.bf16.msra.mxu0 0
        %1350 = vmatprep.subr.bf16.mxu0 0
        %1351 = vmatpush1.bf16.msra.mxu0 0
        %1352 = vmatprep.subr.bf16.mxu0 0
        %1353 = vmatpush1.bf16.msra.mxu0 0
        %1354 = vmatprep.subr.bf16.mxu0 0
        %1355 = vmatpush1.bf16.msra.mxu0 0
        %1356 = vmatprep.subr.bf16.mxu0 0
        %1357 = vmatpush1.bf16.msra.mxu0 0
        %1358 = vmatprep.subr.bf16.mxu0 0
        %1359 = vmatpush1.bf16.msra.mxu0 0
        %1360 = vmatprep.subr.bf16.mxu0 0
        %1361 = vmatpush1.bf16.msra.mxu0 0
        %1362 = vmatprep.subr.bf16.mxu0 0
        %1363 = vmatpush1.bf16.msra.mxu0 0
        %1364 = vmatprep.subr.bf16.mxu0 0
        %1365 = vmatpush1.bf16.msra.mxu0 0
        %1366 = vmatprep.subr.bf16.mxu0 0
        %1367 = vmatpush1.bf16.msra.mxu0 0
        %1368 = vmatprep.subr.bf16.mxu0 0
        %1369 = vmatpush1.bf16.msra.mxu0 0
        %1370 = vmatprep.subr.bf16.mxu0 0
        %1371 = vmatpush1.bf16.msra.mxu0 0
        %1372 = vmatprep.subr.bf16.mxu0 0
        %1373 = vmatpush1.bf16.msra.mxu0 0
        %1374 = vmatprep.subr.bf16.mxu0 0
        %1375 = vmatpush1.bf16.msra.mxu0 0
        %1376 = vmatprep.mubr.bf16.mxu0 0
        %1377 = vmatmul.mubr.bf16.gmra.mrb[0].mxu0 %v1342
        %v1378 = vpop.f32.mrb[0].mxu0
        %v1379 = vadd.f32 0.0, %v1378
        %v1380 = vpop.f32.mrb[0].mxu0
        %v1381 = vpop.f32.mrb[0].mxu0
        %v1382 = vpop.f32.mrb[0].mxu0
        %1383 = vdwg.mxu0
        %1385 = vrot.lane.b32.xlu0 %v1171, 16
        %v1386 = vpop.permute.xlu0 %1385
        %v1389 = vsel %vm990, %v1167, %v1386
        %1391 = vrot.lane.b32.xlu0 %v1173, 16
        %v1392 = vpop.permute.xlu0 %1391
        %v1395 = vsel %vm990, %v1169, %v1392
        %v1397 = vrot.slane %v1395, 4
        %v1399 = vsel %vm781, %v1389, %v1397
        %v1400 = vld [vmem:[%s15] sm:$0xf]
        %v1401 = vld [vmem:[%s15 + $0x4] sm:$0xf]
        %v1402 = vld [vmem:[%s15 + $0x8] sm:$0xf]
        %v1403 = vld [vmem:[%s15 + $0xc] sm:$0xf]
        %v1408 = vunpack.c.l.b16 %v1400
        %v1409 = vunpack.c.l.b16 %v1401
        %v1410 = vunpack.c.l.b16 %v1402
        %v1411 = vunpack.c.l.b16 %v1403
        %v1412 = vpack.c.b16 %v1409, %v1408
        %v1413 = vpack.c.b16 %v1411, %v1410
        %vm1416 = vcmask 261120
        %v1417 = vsel %vm1416, %v1399, 0
        %1419 = vmatprep.subr.bf16.mxu0 0
        %1420 = vmatpush1.bf16.msra.mxu0 %v1412
        %1421 = vmatprep.subr.bf16.mxu0 0
        %1422 = vmatpush1.bf16.msra.mxu0 %v1413
        %1423 = vmatprep.subr.bf16.mxu0 0
        %1424 = vmatpush1.bf16.msra.mxu0 0
        %1425 = vmatprep.subr.bf16.mxu0 0
        %1426 = vmatpush1.bf16.msra.mxu0 0
        %1427 = vmatprep.subr.bf16.mxu0 0
        %1428 = vmatpush1.bf16.msra.mxu0 0
        %1429 = vmatprep.subr.bf16.mxu0 0
        %1430 = vmatpush1.bf16.msra.mxu0 0
        %1431 = vmatprep.subr.bf16.mxu0 0
        %1432 = vmatpush1.bf16.msra.mxu0 0
        %1433 = vmatprep.subr.bf16.mxu0 0
        %1434 = vmatpush1.bf16.msra.mxu0 0
        %1435 = vmatprep.subr.bf16.mxu0 0
        %1436 = vmatpush1.bf16.msra.mxu0 0
        %1437 = vmatprep.subr.bf16.mxu0 0
        %1438 = vmatpush1.bf16.msra.mxu0 0
        %1439 = vmatprep.subr.bf16.mxu0 0
        %1440 = vmatpush1.bf16.msra.mxu0 0
        %1441 = vmatprep.subr.bf16.mxu0 0
        %1442 = vmatpush1.bf16.msra.mxu0 0
        %1443 = vmatprep.subr.bf16.mxu0 0
        %1444 = vmatpush1.bf16.msra.mxu0 0
        %1445 = vmatprep.subr.bf16.mxu0 0
        %1446 = vmatpush1.bf16.msra.mxu0 0
        %1447 = vmatprep.subr.bf16.mxu0 0
        %1448 = vmatpush1.bf16.msra.mxu0 0
        %1449 = vmatprep.subr.bf16.mxu0 0
        %1450 = vmatpush1.bf16.msra.mxu0 0
        %1451 = vmatprep.mubr.bf16.mxu0 0
        %1452 = vmatmul.mubr.bf16.gmra.mrb[0].mxu0 %v1417
        %v1453 = vpop.f32.mrb[0].mxu0
        %v1454 = vadd.f32 0.0, %v1453
        %v1455 = vpop.f32.mrb[0].mxu0
        %v1456 = vpop.f32.mrb[0].mxu0
        %v1457 = vadd.f32 0.0, %v1456
        %v1458 = vpop.f32.mrb[0].mxu0
        %1459 = vdwg.mxu0
        %1460 = vst.msk [vmem:[%s748] sm:$0xff] %vm794, %v1226
        %1461 = vst.msk [vmem:[%s752] sm:$0xff] %vm794, %v1277
        %1462 = vst.msk [vmem:[%s756] sm:$0xff] %vm794, %v1328
        %1463 = vst.msk [vmem:[%s760] sm:$0xff] %vm794, %v1379
        %1465 = vrot.lane.b32.xlu0 %v1457, 16
        %v1466 = vpop.permute.xlu0 %1465
        %v1468 = vsel %vm990, %v1454, %v1466
        %1469 = vst.msk [vmem:[%s724] sm:$0xff] %vm1416, %v1468
        %p1470 = scmp.lt.s32.totalorder %s36, 1
        %s1471 = scalar_select %p1470, %s36, 1
        %s1472 = smul.addr %s1471, 8
        %s1473 = scalar_lea.vmem %s17, %s1472
        %p1474 = scmp.lt.s32.totalorder %s36, 1
        %s1475 = scalar_select %p1474, %s36, 1
        %s1476 = smul.addr %s1475, 8
        %s1477 = scalar_lea.vmem %s18, %s1476
        %p1478 = scmp.lt.s32.totalorder %s36, 1
        %s1479 = scalar_select %p1478, %s36, 1
        %s1480 = smul.addr %s1479, 8
        %s1481 = scalar_lea.vmem %s19, %s1480
        %p1482 = scmp.lt.s32.totalorder %s36, 1
        %s1483 = scalar_select %p1482, %s36, 1
        %s1484 = smul.addr %s1483, 8
        %s1485 = scalar_lea.vmem %s20, %s1484
        %s1486 = sand.u32 %s530, 1
        %s1487 = scalar_lea.sflag [#allocation3], %s1486
        %s1488 = sand.u32 %s530, 1
        %s1489 = smul.addr %s1488, 8
        %s1490 = scalar_lea.vmem [#allocation2], %s1489
        // Predicated region
        $region89: #{tpu_custom_call.1} parent=87 // pred_check
          %p1491 = pneg %p436
        $region90: #{tpu_custom_call.1} parent=87 // pred_check_branch
          %1493 = sbr.rel (%p1491) target = $region92
        $region91: #{tpu_custom_call.1} parent=87 // pred_region
          _
        $region92: #{tpu_custom_call.1} parent=87 // pred_fallthru
          _
        // Predicated region
        $region93: #{tpu_custom_call.1} parent=87 // pred_check
          %p1494 = pneg %p462
        $region94: #{tpu_custom_call.1} parent=87 // pred_check_branch
          %1496 = sbr.rel (%p1494) target = $region96
        $region95: #{tpu_custom_call.1} parent=87 // pred_region
          _
        $region96: #{tpu_custom_call.1} parent=87 // pred_fallthru
          _
        // Predicated region
        $region97: #{tpu_custom_call.1} parent=87 // pred_check
          %p1497 = pneg %p488
        $region98: #{tpu_custom_call.1} parent=87 // pred_check_branch
          %1499 = sbr.rel (%p1497) target = $region100
        $region99: #{tpu_custom_call.1} parent=87 // pred_region
          _
        $region100: #{tpu_custom_call.1} parent=87 // pred_fallthru
          _
        // Predicated region
        $region101: #{tpu_custom_call.1} parent=87 // pred_check
          %p1500 = pneg %p514
        $region102: #{tpu_custom_call.1} parent=87 // pred_check_branch
          %1502 = sbr.rel (%p1500) target = $region104
        $region103: #{tpu_custom_call.1} parent=87 // pred_region
          _
        $region104: #{tpu_custom_call.1} parent=87 // pred_fallthru
          _
        // Predicated region
        $region105: #{tpu_custom_call.1} parent=87 // pred_check
          %p1503 = pneg %p540
        $region106: #{tpu_custom_call.1} parent=87 // pred_check_branch
          %1505 = sbr.rel (%p1503) target = $region108
        $region107: #{tpu_custom_call.1} parent=87 // pred_region
          %s1507 = ssub.s32 128, 128
          %1508 = vsyncadd %s1487, %s1507
          %s1509 = smul.addr %s36, 128
          %s1510 = scalar_lea.hbm %s21, %s1509
          %s1512 = sshll.u32 %s1490, 4
          %s1513 = int_to_ptr.vmem [resolvable:$true] %s1512
          %1515 = dma.vmem_to_hbm [thread:$0]  %s1513, 128, %s1510, %s1487
        $region108: #{tpu_custom_call.1} parent=87 // pred_fallthru
          _
      $region88: #{tpu_custom_call.1} parent=5 // pred_fallthru
        _
      %p1516 = scmp.le.s32.totalorder 2, %s31
      // Predicated region
      $region109: #{tpu_custom_call.1} parent=5 // pred_check
        %p1517 = pneg %p1516
      $region110: #{tpu_custom_call.1} parent=5 // pred_check_branch
        %1519 = sbr.rel (%p1517) target = $region112
      $region111: #{tpu_custom_call.1} parent=5 // pred_region
        %s1520 = ssub.s32 %s31, 2
        // Predicated region
        $region113: #{tpu_custom_call.1} parent=111 // pred_check
          %p1521 = pneg %p442
        $region114: #{tpu_custom_call.1} parent=111 // pred_check_branch
          %1523 = sbr.rel (%p1521) target = $region116
        $region115: #{tpu_custom_call.1} parent=111 // pred_region
          %p1524 = scmp.lt.s32.totalorder %s37, 1
          %s1525 = scalar_select %p1524, %s37, 1
          %s1526 = smul.addr %s1525, 8
          %s1527 = scalar_lea.vmem %s17, %s1526
        $region116: #{tpu_custom_call.1} parent=111 // pred_fallthru
          _
        // Predicated region
        $region117: #{tpu_custom_call.1} parent=111 // pred_check
          %p1528 = pneg %p468
        $region118: #{tpu_custom_call.1} parent=111 // pred_check_branch
          %1530 = sbr.rel (%p1528) target = $region120
        $region119: #{tpu_custom_call.1} parent=111 // pred_region
          %p1531 = scmp.lt.s32.totalorder %s37, 1
          %s1532 = scalar_select %p1531, %s37, 1
          %s1533 = smul.addr %s1532, 8
          %s1534 = scalar_lea.vmem %s18, %s1533
        $region120: #{tpu_custom_call.1} parent=111 // pred_fallthru
          _
        // Predicated region
        $region121: #{tpu_custom_call.1} parent=111 // pred_check
          %p1535 = pneg %p494
        $region122: #{tpu_custom_call.1} parent=111 // pred_check_branch
          %1537 = sbr.rel (%p1535) target = $region124
        $region123: #{tpu_custom_call.1} parent=111 // pred_region
          %p1538 = scmp.lt.s32.totalorder %s37, 1
          %s1539 = scalar_select %p1538, %s37, 1
          %s1540 = smul.addr %s1539, 8
          %s1541 = scalar_lea.vmem %s19, %s1540
        $region124: #{tpu_custom_call.1} parent=111 // pred_fallthru
          _
        // Predicated region
        $region125: #{tpu_custom_call.1} parent=111 // pred_check
          %p1542 = pneg %p520
        $region126: #{tpu_custom_call.1} parent=111 // pred_check_branch
          %1544 = sbr.rel (%p1542) target = $region128
        $region127: #{tpu_custom_call.1} parent=111 // pred_region
          %p1545 = scmp.lt.s32.totalorder %s37, 1
          %s1546 = scalar_select %p1545, %s37, 1
          %s1547 = smul.addr %s1546, 8
          %s1548 = scalar_lea.vmem %s20, %s1547
        $region128: #{tpu_custom_call.1} parent=111 // pred_fallthru
          _
        // Predicated region
        $region129: #{tpu_custom_call.1} parent=111 // pred_check
          %p1549 = pneg %p546
        $region130: #{tpu_custom_call.1} parent=111 // pred_check_branch
          %1551 = sbr.rel (%p1549) target = $region132
        $region131: #{tpu_custom_call.1} parent=111 // pred_region
          %s1552 = sand.u32 %s531, 1
          %s1553 = scalar_lea.sflag [#allocation3], %s1552
          %s1554 = sand.u32 %s531, 1
          %s1555 = smul.addr %s1554, 8
          %s1556 = scalar_lea.vmem [#allocation2], %s1555
          %1557 = dma.done %s1553, 128
        $region132: #{tpu_custom_call.1} parent=111 // pred_fallthru
          _
      $region112: #{tpu_custom_call.1} parent=5 // pred_fallthru
        _
    $region6: #{tpu_custom_call.1} parent=1 // loop_footer
      %s35 = sadd.s32 1, %s31
    $region7: #{tpu_custom_call.1} parent=1 // loop_footer_branch
      %30 = sbr.rel target = $region3
    $region8: #{tpu_custom_call.1} parent=1 // loop_exit
      _
    %1558 = vsyncpa [#allocation3], 1
    %s1559 = scalar_lea.sflag [#allocation3], 1
    %1560 = vsyncpa %s1559, 1

</llo_original>
